<compile_context>
chip_gen: v7x
topology: tpu7x:2x2x1
jax: 0.10.0
libtpu: 0.0.40
codegen_flags: <defaults>
</compile_context>

<pallas_src>
import jax
import jax.numpy as jnp
from jax.experimental import pallas as pl
from jax.experimental.pallas import tpu as pltpu


def _round_up(x, m):
    return -(-x // m) * m


# ---------------------------------------------------------------------------
# Kernel: per-(Q-tile, class) reconstruction distance (the matmul hot path)
# ---------------------------------------------------------------------------
def _recon_dist_kernel(q_ref, ct_ref, w_ref, out_ref):
    """grid = (num_q_tiles, num_classes).

      q_ref   : (TQ, D)     f32 queries (tile of B*R rows; class-invariant)
      ct_ref  : (1, D, Np)  bf16 support^T for class c        (n zero-padded to Np)
      w_ref   : (1, Np, D)  bf16 W_c = (sup sup^T + lam I)^-1 @ sup  (zero-padded rows)
      out_ref : (1, 1, TQ)  f32 squared reconstruction distance per query
    """
    q = q_ref[...]                               # (TQ, D) f32 (kept f32 for the residual)
    qb = q.astype(jnp.bfloat16)
    ct = ct_ref[0]                               # (D, Np) bf16
    w = w_ref[0]                                 # (Np, D) bf16

    # Low-rank chain (zero padding n->Np is exact: padded cols of g and rows of W are 0).
    g = jnp.dot(qb, ct, preferred_element_type=jnp.float32)                  # (TQ, Np)
    t = jnp.dot(g.astype(jnp.bfloat16), w, preferred_element_type=jnp.float32)  # (TQ, D)

    diff = t - q
    dist = jnp.sum(diff * diff, axis=1)          # (TQ,)
    out_ref[...] = dist[None, None, :]


def recon_dist_pallas(query, ct_pad, w_pad, *, tq):
    """query: (Qp, D) f32; ct_pad: (C, D, Np) bf16; w_pad: (C, Np, D) bf16.

    Returns dist of shape (C, Qp) — squared distance of every query to its
    ridge-regression reconstruction from each class dictionary.
    """
    Qp, D = query.shape
    C, _, Np = ct_pad.shape
    nq = Qp // tq

    out = pl.pallas_call(
        _recon_dist_kernel,
        out_shape=jax.ShapeDtypeStruct((C, 1, Qp), jnp.float32),
        grid_spec=pltpu.PrefetchScalarGridSpec(
            num_scalar_prefetch=0,
            grid=(nq, C),                                        # classes on the inner axis
            in_specs=[
                pl.BlockSpec((tq, D), lambda i, c: (i, 0)),       # queries (invariant along c)
                pl.BlockSpec((1, D, Np), lambda i, c: (c, 0, 0)),  # support^T
                pl.BlockSpec((1, Np, D), lambda i, c: (c, 0, 0)),  # W_c
            ],
            out_specs=pl.BlockSpec((1, 1, tq), lambda i, c: (c, 0, i)),
        ),
        compiler_params=pltpu.CompilerParams(
            dimension_semantics=("parallel", "parallel")),
    )(query, ct_pad, w_pad)
    return out[:, 0, :]  # (C, Qp)


# ---------------------------------------------------------------------------
# Epilogue helpers (tiny (B, C) work: plain jnp, no extra pallas_call)
# ---------------------------------------------------------------------------
# TODO(synk): `min_max_scaler` is referenced but not defined in the provided
# snippet; implemented here as the standard per-row (x - min) / (max - min).
def min_max_scaler(x):
    mn = jnp.min(x, axis=1, keepdims=True)
    mx = jnp.max(x, axis=1, keepdims=True)
    return (x - mn) / (mx - mn)


# ---------------------------------------------------------------------------
# Parameter init (deterministic, mirrors Classifier.__init__ shapes)
# ---------------------------------------------------------------------------
def init_classifier_params(key, num_classes, n=20, d=512):
    k_low, k_mid, k_high = jax.random.split(key, 3)
    return {
        "r": jnp.zeros((2,), jnp.float32),  # unused in forward (parity only)
        "low": jax.random.normal(k_low, (num_classes, n, d // 4), dtype=jnp.float32),
        "mid": jax.random.normal(k_mid, (num_classes, n, d // 2), dtype=jnp.float32),
        "high": jax.random.normal(k_high, (num_classes, n, d), dtype=jnp.float32),
    }


# ---------------------------------------------------------------------------
# Forward (glue in plain JAX, hot path in Pallas)
# ---------------------------------------------------------------------------
def classifier_forward(params, x):
    high = params["high"].astype(jnp.float32)       # (C, n, D)
    C, n, D = high.shape
    B, R, _ = x.shape
    lam = n / D                                      # support.size(1) / support.size(2)

    # Query-independent per-class precompute (tiny: C*n*n*D) in plain JAX.
    cct = jnp.einsum("cnd,cmd->cnm", high, high)                           # (C, n, n)
    inv = jnp.linalg.inv(cct + lam * jnp.eye(n, dtype=cct.dtype)[None])    # (C, n, n)
    w = jnp.einsum("cnm,cmd->cnd", inv, high)                              # (C, n, D)

    # Zero-pad n -> Np (bf16-sublane friendly). Exact for the low-rank chain:
    # padded columns of g = q @ ct are zero, padded rows of W are zero.
    Np = _round_up(n, 16)
    ct_pad = jnp.pad(jnp.transpose(high, (0, 2, 1)),
                     ((0, 0), (0, 0), (0, Np - n))).astype(jnp.bfloat16)   # (C, D, Np)
    w_pad = jnp.pad(w, ((0, 0), (0, Np - n), (0, 0))).astype(jnp.bfloat16)  # (C, Np, D)

    # Queries, padded to a multiple of the Q tile (padded zero rows give dist 0
    # and are sliced off before the mean).
    Q = B * R
    tq = min(512, _round_up(Q, 128))     # <= 512 rows * 512 * 4B = 1 MiB per buffer
    Qp = _round_up(Q, tq)
    query = x.reshape(Q, D).astype(jnp.float32)
    query = jnp.pad(query, ((0, Qp - Q), (0, 0)))

    dist = recon_dist_pallas(query, ct_pad, w_pad, tq=tq)                  # (C, Qp)
    recon = dist[:, :Q].T.reshape(B, R, C).mean(axis=1)                    # (B, C)
    logits = -recon
    return min_max_scaler(logits)                                          # (B, C)


# Pure-JAX reference (mirrors the PyTorch code) for a sanity check.
def classifier_forward_ref(params, x):
    high = params["high"]
    C, n, D = high.shape
    B, R, _ = x.shape
    lam = n / D
    ct = jnp.transpose(high, (0, 2, 1))
    cct = jnp.einsum("cnd,cdm->cnm", high, ct)
    inv = jnp.linalg.inv(cct + lam * jnp.eye(n)[None])
    ctinv = jnp.einsum("cdn,cnm,cme->cde", ct, inv, high)                  # (C, D, D)
    q = x.reshape(B * R, D)
    t = jnp.einsum("qd,cde->cqe", q, ctinv)                                # (C, Q, D)
    dist = jnp.sum((t - q[None]) ** 2, axis=2).T                           # (Q, C)
    recon = dist.reshape(B, R, C).mean(axis=1)
    logits = -recon
    mn = logits.min(axis=1, keepdims=True)
    mx = logits.max(axis=1, keepdims=True)
    return (logits - mn) / (mx - mn)


if __name__ == "__main__":
    num_classes, n, d = 4, 20, 512
    B, R = 2, 64                                   # e.g. 8x8 conv feature map

    key = jax.random.PRNGKey(0)
    k_param, k_x = jax.random.split(key)
    params = init_classifier_params(k_param, num_classes, n, d)
    x = jax.random.normal(k_x, (B, R, d), dtype=jnp.float32)

    fwd = jax.jit(classifier_forward)
    out = jax.block_until_ready(fwd(params, x))

    assert out.shape == (B, num_classes), out.shape
    ref = classifier_forward_ref(params, x)
    assert jnp.allclose(out, ref, atol=5e-2, rtol=5e-2), (out, ref)

    print("KERNEL_OK")
</pallas_src>

<mosaic_0001>
module attributes {stable_mosaic.version = 11 : i64} {
  func.func @_recon_dist_kernel(%arg0: i32, %arg1: i32, %arg2: memref<128x512xf32, #tpu.memory_space<vmem>>, %arg3: memref<1x512x32xbf16, #tpu.memory_space<vmem>>, %arg4: memref<1x32x512xbf16, #tpu.memory_space<vmem>>, %arg5: memref<1x1x128xf32, #tpu.memory_space<vmem>>) attributes {dimension_semantics = [#tpu.dimension_semantics<parallel>, #tpu.dimension_semantics<parallel>], iteration_bounds = array<i64: 1, 4>, scalar_prefetch = 0 : i64, scratch_operands = 0 : i64, tpu.core_type = #tpu.core_type<tc>, window_params = [{transform_indices = @transform_0, window_bounds = array<i64: 128, 512>}, {transform_indices = @transform_1, window_bounds = array<i64: 1, 512, 32>}, {transform_indices = @transform_2, window_bounds = array<i64: 1, 32, 512>}, {transform_indices = @transform_3, window_bounds = array<i64: 1, 1, 128>}]} {
    %c0 = arith.constant 0 : index
    %c0_0 = arith.constant 0 : index
    %0 = vector.load %arg2[%c0, %c0_0] : memref<128x512xf32, #tpu.memory_space<vmem>>, vector<128x512xf32>
    %1 = arith.truncf %0 : vector<128x512xf32> to vector<128x512xbf16>
    %c0_1 = arith.constant 0 : index
    %c0_2 = arith.constant 0 : index
    %c0_3 = arith.constant 0 : index
    %2 = vector.load %arg3[%c0_1, %c0_2, %c0_3] : memref<1x512x32xbf16, #tpu.memory_space<vmem>>, vector<1x512x32xbf16>
    %3 = vector.shape_cast %2 : vector<1x512x32xbf16> to vector<512x32xbf16>
    %c0_4 = arith.constant 0 : index
    %c0_5 = arith.constant 0 : index
    %c0_6 = arith.constant 0 : index
    %4 = vector.load %arg4[%c0_4, %c0_5, %c0_6] : memref<1x32x512xbf16, #tpu.memory_space<vmem>>, vector<1x32x512xbf16>
    %5 = vector.shape_cast %4 : vector<1x32x512xbf16> to vector<32x512xbf16>
    %cst = arith.constant dense<0.000000e+00> : vector<128x32xf32>
    %6 = tpu.matmul %1, %3, %cst {dimension_numbers = #tpu.dot_dimension_numbers<[1], [0], [0], [1], [0, 0, 1, 1], [], []>} : vector<128x512xbf16>, vector<512x32xbf16>, vector<128x32xf32> -> vector<128x32xf32>
    %7 = arith.truncf %6 : vector<128x32xf32> to vector<128x32xbf16>
    %cst_7 = arith.constant dense<0.000000e+00> : vector<128x512xf32>
    %8 = tpu.matmul %7, %5, %cst_7 {dimension_numbers = #tpu.dot_dimension_numbers<[1], [0], [0], [1], [0, 0, 1, 1], [], []>} : vector<128x32xbf16>, vector<32x512xbf16>, vector<128x512xf32> -> vector<128x512xf32>
    %9 = arith.subf %8, %0 : vector<128x512xf32>
    %10 = arith.mulf %9, %9 : vector<128x512xf32>
    %cst_8 = arith.constant dense<0.000000e+00> : vector<128xf32>
    %11 = vector.multi_reduction <add>, %10, %cst_8 [1] : vector<128x512xf32> to vector<128xf32>
    %12 = vector.shape_cast %11 : vector<128xf32> to vector<1x1x128xf32>
    %c0_9 = arith.constant 0 : index
    %c0_10 = arith.constant 0 : index
    %c0_11 = arith.constant 0 : index
    %13 = vector.load %arg5[%c0_9, %c0_10, %c0_11] : memref<1x1x128xf32, #tpu.memory_space<vmem>>, vector<1x1x128xf32>
    tpu.vector_store %arg5[%c0_9, %c0_10, %c0_11], %12 {strides = array<i32>} : memref<1x1x128xf32, #tpu.memory_space<vmem>>, vector<1x1x128xf32>,
    return
  }
  func.func @transform_0(%arg0: i32, %arg1: i32) -> (i32, i32) {
    %c0_i32 = arith.constant 0 : i32
    %c0_i32_0 = arith.constant 0 : i32
    return %arg0, %c0_i32 : i32, i32
  }
  func.func @transform_1(%arg0: i32, %arg1: i32) -> (i32, i32, i32) {
    %c0_i32 = arith.constant 0 : i32
    %c0_i32_0 = arith.constant 0 : i32
    %c0_i32_1 = arith.constant 0 : i32
    return %arg1, %c0_i32, %c0_i32_0 : i32, i32, i32
  }
  func.func @transform_2(%arg0: i32, %arg1: i32) -> (i32, i32, i32) {
    %c0_i32 = arith.constant 0 : i32
    %c0_i32_0 = arith.constant 0 : i32
    %c0_i32_1 = arith.constant 0 : i32
    return %arg1, %c0_i32, %c0_i32_0 : i32, i32, i32
  }
  func.func @transform_3(%arg0: i32, %arg1: i32) -> (i32, i32, i32) {
    %c0_i32 = arith.constant 0 : i32
    %c0_i32_0 = arith.constant 0 : i32
    return %arg1, %c0_i32, %arg0 : i32, i32, i32
  }
}

</mosaic_0001>

<llo_original>
// kernel: custom-call.11
$region0: #{custom-call.11}
  %s0 = inlined_call_operand.vmem [shape: f32[4,20,20], index: 0, kind: input, shape index: {}]
  %s1 = inlined_call_operand.vmem [shape: f32[4,20,20], index: 1, kind: output, shape index: {0}]
  %s2 = inlined_call_operand.hbm [shape: s32[4,20], index: 2, kind: output, shape index: {1}]
  %s3 = inlined_call_operand.vmem [shape: s32[4,20], index: 3, kind: output, shape index: {2}]
  %4 = xla_tuple %s1, %s2, %s3
  $region1: #{custom-call.11} parent=0
    #allocation0 [shape = 'u8[24576]{0}', space=vmem, size = 0x6000, scoped, tag = 'operand span for operand 0']
    #allocation1 [shape = 'u8[24576]{0}', space=vmem, size = 0x6000, scoped, tag = 'operand span for operand 1']
    #allocation2 [shape = 'u8[4096]{0}', space=vmem, size = 0x1000, scoped, tag = 'operand span for operand 2']
    #allocation3 [shape = 'u8[4096]{0}', space=vmem, size = 0x1000, scoped, tag = 'packed  for operand 2']
    #allocation4 [shape = 's32[2]{0}', space=sflag, size = 0x8, scoped, tag = 'scoped memory for custom-call.11']
    #allocation5 [shape = 'u8[4096]{0}', space=vmem, size = 0x1000, scoped, tag = 'operand span for operand 3']
    #allocation6 [shape = 'u8[4096]{0}', space=vmem, size = 0x1000, scoped, tag = 'packed  for operand 3']
    %5 = vsyncpa [#allocation4], 0
    %s6 = scalar_lea.sflag [#allocation4], 1
    %7 = vsyncpa %s6, 0
    loop: start=0, step=1, limit=6
    $region2: #{custom-call.11} parent=1 // loop_pre_header
      _
    $region3: #{custom-call.11} parent=1 // loop_header
      %s9 = sphi 0, %s13
      %p10 = scmp.ge.s32.totalorder %s9, 6
      %s21 = sphi 0, %s23
      %s24 = sphi 0, %s21
      %s25 = sphi 0, %s24
      %s41 = sphi 0, %s25
      %s49 = sphi 0, %s51
      %s52 = sphi 0, %s49
      %s53 = sphi 0, %s52
      %s69 = sphi 0, %s53
    $region4: #{custom-call.11} parent=1 // loop_header_branch
      %12 = sbr.rel (%p10) target = $region8
    $region5: #{custom-call.11} parent=1 // loop_body
      %s14 = ssub.s32 %s9, 1
      %s15 = ssub.s32 %s9, 2
      %s16 = sadd.s32 %s9, 1
      %s17 = sshrl.u32 %s9, 3
      %s18 = sshrl.u32 %s16, 3
      %s19 = ssub.s32 %s17, %s18
      %p20 = scmp.eq.s32.totalorder %s19, 0
      %s22 = sadd.s32 %s21, 1
      %s23 = scalar_select %p20, %s21, %s22
      %p26 = pneg %p20
      %p27 = scmp.eq.s32.totalorder %s9, 3
      %p28 = por %p26, %p27
      %p29 = scmp.ne.s32.totalorder %s21, %s24
      %p30 = scmp.eq.s32.totalorder %s9, 0
      %p31 = por %p29, %p30
      %p32 = scmp.ne.s32.totalorder %s21, %s24
      %p33 = scmp.eq.s32.totalorder %s14, 3
      %p34 = por %p32, %p33
      %p35 = scmp.ne.s32.totalorder %s24, %s25
      %p36 = scmp.eq.s32.totalorder %s14, 0
      %p37 = por %p35, %p36
      %p38 = scmp.ne.s32.totalorder %s24, %s25
      %p39 = scmp.eq.s32.totalorder %s15, 3
      %p40 = por %p38, %p39
      %p42 = scmp.ne.s32.totalorder %s25, %s41
      %p43 = scmp.eq.s32.totalorder %s15, 0
      %p44 = por %p42, %p43
      %s45 = sshrl.u32 %s9, 3
      %s46 = sshrl.u32 %s16, 3
      %s47 = ssub.s32 %s45, %s46
      %p48 = scmp.eq.s32.totalorder %s47, 0
      %s50 = sadd.s32 %s49, 1
      %s51 = scalar_select %p48, %s49, %s50
      %p54 = pneg %p48
      %p55 = scmp.eq.s32.totalorder %s9, 3
      %p56 = por %p54, %p55
      %p57 = scmp.ne.s32.totalorder %s49, %s52
      %p58 = scmp.eq.s32.totalorder %s9, 0
      %p59 = por %p57, %p58
      %p60 = scmp.ne.s32.totalorder %s49, %s52
      %p61 = scmp.eq.s32.totalorder %s14, 3
      %p62 = por %p60, %p61
      %p63 = scmp.ne.s32.totalorder %s52, %s53
      %p64 = scmp.eq.s32.totalorder %s14, 0
      %p65 = por %p63, %p64
      %p66 = scmp.ne.s32.totalorder %s52, %s53
      %p67 = scmp.eq.s32.totalorder %s15, 3
      %p68 = por %p66, %p67
      %p70 = scmp.ne.s32.totalorder %s53, %s69
      %p71 = scmp.eq.s32.totalorder %s15, 0
      %p72 = por %p70, %p71
      %p73 = scmp.le.s32.totalorder 1, %s9
      %p74 = scmp.lt.s32.totalorder %s9, 5
      %p75 = pnand %p73, %p74
      %p76 = pneg %p75
      // Predicated region
      $region9: #{custom-call.11} parent=5 // pred_check
        _
      $region10: #{custom-call.11} parent=5 // pred_check_branch
        %78 = sbr.rel (%p75) target = $region12
      $region11: #{custom-call.11} parent=5 // pred_region
        %s79 = ssub.s32 %s9, 1
      $region12: #{custom-call.11} parent=5 // pred_fallthru
        _
      %p80 = scmp.lt.s32.totalorder %s9, 4
      // Predicated region
      $region13: #{custom-call.11} parent=5 // pred_check
        %p81 = pneg %p80
      $region14: #{custom-call.11} parent=5 // pred_check_branch
        %83 = sbr.rel (%p81) target = $region16
      $region15: #{custom-call.11} parent=5 // pred_region
        %s84 = sand.u32 %s9, 1
        %s85 = sand.u32 %s9, 1
        %s86 = smul.addr %s85, 24
        %s87 = scalar_lea.vmem [#allocation0], %s86
        %s88 = smul.addr %s9, 24
        %s89 = scalar_lea.vmem %s0, %s88
        // Predicated region
        $region17: #{custom-call.11} parent=15 // pred_check
          _
        $region18: #{custom-call.11} parent=15 // pred_check_branch
          %91 = sbr.rel (0) target = $region20
        $region19: #{custom-call.11} parent=15 // pred_region
          // Predicated region
          $region21: #{custom-call.11} parent=19 // pred_check
            _
          $region22: #{custom-call.11} parent=19 // pred_check_branch
            %93 = sbr.rel (0) target = $region24
          $region23: #{custom-call.11} parent=19 // pred_region
            loop: start=0, step=1, limit=1
            $region25: #{custom-call.11} parent=23 // loop_pre_header
              _
            $region26: #{custom-call.11} parent=23 // loop_header
              %s95 = sphi 0, %s99
              %p96 = scmp.ge.s32.totalorder %s95, 1
              %s100 = sphi %s89, %s89
              %s101 = sphi %s87, %s87
            $region27: #{custom-call.11} parent=23 // loop_header_branch
              %98 = sbr.rel (%p96) target = $region31
            $region28: #{custom-call.11} parent=23 // loop_body
              %v102 = vld [vmem:[%s100] sm:$0xff]
              %103 = vst [vmem:[%s101] sm:$0xff] %v102
              %v104 = vld [vmem:[%s100 + $0x8] sm:$0xff]
              %105 = vst [vmem:[%s101 + $0x8] sm:$0xff] %v104
              %v106 = vld [vmem:[%s100 + $0x10] sm:$0xff]
              %107 = vst [vmem:[%s101 + $0x10] sm:$0xff] %v106
            $region29: #{custom-call.11} parent=23 // loop_footer
              %s99 = sadd.s32 1, %s95
            $region30: #{custom-call.11} parent=23 // loop_footer_branch
              %94 = sbr.rel target = $region26
            $region31: #{custom-call.11} parent=23 // loop_exit
              _
          $region24: #{custom-call.11} parent=19 // pred_fallthru
            _
          // Predicated region
          $region32: #{custom-call.11} parent=19 // pred_check
            _
          $region33: #{custom-call.11} parent=19 // pred_check_branch
            %109 = sbr.rel target = $region35
          $region34: #{custom-call.11} parent=19 // pred_region
            _
          $region35: #{custom-call.11} parent=19 // pred_fallthru
            _
        $region20: #{custom-call.11} parent=15 // pred_fallthru
          _
        %110 = vnop
      $region16: #{custom-call.11} parent=5 // pred_fallthru
        _
      %p111 = scmp.le.s32.totalorder 1, %s9
      %p112 = scmp.lt.s32.totalorder %s9, 5
      %p113 = pnand %p111, %p112
      %p114 = pneg %p113
      // Predicated region
      $region36: #{custom-call.11} parent=5 // pred_check
        _
      $region37: #{custom-call.11} parent=5 // pred_check_branch
        %116 = sbr.rel (%p113) target = $region39
      $region38: #{custom-call.11} parent=5 // pred_region
        #allocation7 [shape = 's32[20,128]{1,0}', space=vmem, size = 0x3000, scoped, tag = 'scratch for permutations']
        %s117 = ssub.s32 %s9, 1
        %s118 = sand.u32 %s14, 1
        %s119 = sand.u32 %s14, 1
        %s120 = smul.addr %s119, 24
        %s121 = scalar_lea.vmem [#allocation0], %s120
        %s122 = sand.u32 %s14, 1
        %s123 = sand.u32 %s14, 1
        %s124 = smul.addr %s123, 24
        %s125 = scalar_lea.vmem [#allocation0], %s124
        %s126 = sand.u32 %s14, 1
        %s127 = sand.u32 %s14, 1
        %s128 = smul.addr %s127, 24
        %s129 = scalar_lea.vmem [#allocation1], %s128
        %p130 = pneg %p37
        %p131 = pneg %p34
        %s132 = sand.u32 %s24, 1
        %s133 = scalar_lea.sflag [#allocation4], %s132
        %s134 = sand.u32 %s24, 1
        %s135 = smul.addr %s134, 4
        %s136 = scalar_lea.vmem [#allocation3], %s135
        %p137 = pneg %p65
        %p138 = pneg %p62
        %s139 = sand.u32 %s52, 1
        %s140 = sand.u32 %s52, 1
        %s141 = smul.addr %s140, 4
        %s142 = scalar_lea.vmem [#allocation6], %s141
        %s143 = sshrl.u32 %s14, 3
        %s144 = sshrl.u32 %s14, 3
        %v145 = vld [vmem:[%s121] sm:$0xff]
        %146 = vst [vmem:[%s129] sm:$0xff] %v145
        %s147 = scalar_lea.vmem %s129, 8 [#allocation1]
        %s148 = scalar_lea.vmem %s121, 8 [#allocation0]
        %v149 = vld [vmem:[%s148] sm:$0xff]
        %150 = vst [vmem:[%s147] sm:$0xff] %v149
        %s151 = scalar_lea.vmem %s129, 16 [#allocation1]
        %s152 = scalar_lea.vmem %s121, 16 [#allocation0]
        %v153 = vld [vmem:[%s152] sm:$0xff]
        %154 = vst [vmem:[%s151] sm:$0xff] %v153
        %s155 = sand.u32 %s14, 7
        %s156 = scalar_lea.vmem [#allocation2], %s155
        %s157 = sand.u32 %s14, 7
        %s158 = scalar_lea.vmem [#allocation5], %s157
        %159 = vst [vmem:[%s156] sm:$0x1] 0
        %v160 = vlaneseq
        %v161 = vshrl.u32 %v160, 7
        %v162 = vmov %v161
        loop: start=0, step=1, limit=3
        $region40: #{custom-call.11} parent=38 // loop_pre_header
          _
        $region41: #{custom-call.11} parent=38 // loop_header
          %s164 = sphi 0, %s168
          %p165 = scmp.ge.s32.totalorder %s164, 3
        $region42: #{custom-call.11} parent=38 // loop_header_branch
          %167 = sbr.rel (%p165) target = $region46
        $region43: #{custom-call.11} parent=38 // loop_body
          %s169 = smul.addr %s164, 8
          %s170 = scalar_lea.vmem [#allocation7], %s169
          %s171 = smul.u32 %s164, 8
          %v172 = vstv %s171
          %v173 = vadd.s32 %v162, %v172
          %174 = vst [vmem:[%s170] sm:$0xff] %v173
        $region44: #{custom-call.11} parent=38 // loop_footer
          %s168 = sadd.s32 1, %s164
        $region45: #{custom-call.11} parent=38 // loop_footer_branch
          %163 = sbr.rel target = $region41
        $region46: #{custom-call.11} parent=38 // loop_exit
          _
        loop: start=0, step=1, limit=20
        $region47: #{custom-call.11} parent=38 // loop_pre_header
          _
        $region48: #{custom-call.11} parent=38 // loop_header
          %s176 = sphi 0, %s180
          %p177 = scmp.ge.s32.totalorder %s176, 20
        $region49: #{custom-call.11} parent=38 // loop_header_branch
          %179 = sbr.rel (%p177) target = $region53
        $region50: #{custom-call.11} parent=38 // loop_body
          %v181 = vstv %s176
          %v182 = vlaneseq
          %v183 = vshrl.u32 %v182, 7
          %v184 = vmov %v183
          %v185 = vld [vmem:[%s129] sm:$0xff]
          %v186 = vand.u32 2147483647, %v185
          %v188 = vstv %s176
          %vm189 = vcmp.ge.s32.totalorder %v184, %v188
          %vm190 = vcmp.lt.s32.totalorder %v184, 20
          %vm191 = vmand %vm189, %vm190
          %vm192 = vcmp.lt.f32.partialorder -inf, %v186
          %vm193 = vmand %vm191, %vm192
          %v194 = vsel %vm193, %v184, %v181
          %v195 = vsel %vm193, %v186, -inf
          %s196 = scalar_lea.vmem %s129, 8 [#allocation1]
          %v197 = vld [vmem:[%s196] sm:$0xff]
          %v198 = vand.u32 2147483647, %v197
          %v199 = vadd.s32 %v184, 8
          %v200 = vstv %s176
          %vm201 = vcmp.ge.s32.totalorder %v199, %v200
          %vm202 = vcmp.lt.s32.totalorder %v199, 20
          %vm203 = vmand %vm201, %vm202
          %vm204 = vcmp.lt.f32.partialorder %v195, %v198
          %vm205 = vmand %vm203, %vm204
          %v206 = vsel %vm205, %v199, %v194
          %v207 = vsel %vm205, %v198, %v195
          %s208 = scalar_lea.vmem %s129, 16 [#allocation1]
          %v209 = vld [vmem:[%s208] sm:$0xff]
          %v210 = vand.u32 2147483647, %v209
          %v211 = vadd.s32 %v184, 16
          %v212 = vstv %s176
          %vm213 = vcmp.ge.s32.totalorder %v211, %v212
          %vm214 = vcmp.lt.s32.totalorder %v211, 20
          %vm215 = vmand %vm213, %vm214
          %vm216 = vcmp.lt.f32.partialorder %v207, %v210
          %vm217 = vmand %vm215, %vm216
          %v218 = vsel %vm217, %v211, %v206
          %v219 = vsel %vm217, %v210, %v207
          %v220 = vrot.slane %v219, 1
          %v221 = vrot.slane %v218, 1
          %vm222 = vcmp.ge.f32.partialorder %v220, %v219
          %v223 = vsel %vm222, %v220, %v219
          %v224 = vsel %vm222, %v221, %v218
          %v225 = vrot.slane %v220, 1
          %v226 = vrot.slane %v221, 1
          %vm227 = vcmp.ge.f32.partialorder %v225, %v223
          %v228 = vsel %vm227, %v225, %v223
          %v229 = vsel %vm227, %v226, %v224
          %v230 = vrot.slane %v225, 1
          %v231 = vrot.slane %v226, 1
          %vm232 = vcmp.ge.f32.partialorder %v230, %v228
          %v233 = vsel %vm232, %v230, %v228
          %v234 = vsel %vm232, %v231, %v229
          %v235 = vrot.slane %v230, 1
          %v236 = vrot.slane %v231, 1
          %vm237 = vcmp.ge.f32.partialorder %v235, %v233
          %v238 = vsel %vm237, %v235, %v233
          %v239 = vsel %vm237, %v236, %v234
          %v240 = vrot.slane %v235, 1
          %v241 = vrot.slane %v236, 1
          %vm242 = vcmp.ge.f32.partialorder %v240, %v238
          %v243 = vsel %vm242, %v240, %v238
          %v244 = vsel %vm242, %v241, %v239
          %v245 = vrot.slane %v240, 1
          %v246 = vrot.slane %v241, 1
          %vm247 = vcmp.ge.f32.partialorder %v245, %v243
          %v248 = vsel %vm247, %v245, %v243
          %v249 = vsel %vm247, %v246, %v244
          %v250 = vrot.slane %v245, 1
          %v251 = vrot.slane %v246, 1
          %vm252 = vcmp.ge.f32.partialorder %v250, %v248
          %v253 = vsel %vm252, %v250, %v248
          %v254 = vsel %vm252, %v251, %v249
          %s255 = ssub.s32 128, %s176
          %256 = vrot.lane.b32.xlu0 %v254, %s255
          %v257 = vpop.permute.xlu0 %256
          %s258 = vtos %v257
          %v259 = vstv %s176
          %v260 = vlaneseq
          %v261 = vand.u32 %v260, 127
          %vm262 = vcmp.eq.s32.totalorder %v261, %v259
          %v263 = vstv %s258
          %v264 = vld [vmem:[%s156] ss:$0 sm:$0xff]
          %v265 = vsel %vm262, %v263, %v264
          %266 = vst [vmem:[%s156] sm:$0x1] %v265
          %s267 = scalar_lea.vmem %s129, %s176 [#allocation1]
          %s268 = scalar_lea.vmem %s129, %s258 [#allocation1]
          %v269 = vld [vmem:[%s267] ss:$0 sm:$0xff]
          %v270 = vld [vmem:[%s268] ss:$0 sm:$0xff]
          %271 = vst [vmem:[%s268] sm:$0x1] %v269
          %272 = vst [vmem:[%s267] sm:$0x1] %v270
          %s273 = scalar_lea.vmem [#allocation7], %s176
          %s274 = scalar_lea.vmem [#allocation7], %s258
          %v275 = vld [vmem:[%s273] ss:$0 sm:$0xff]
          %v276 = vld [vmem:[%s274] ss:$0 sm:$0xff]
          %277 = vst [vmem:[%s274] sm:$0x1] %v275
          %278 = vst [vmem:[%s273] sm:$0x1] %v276
          %vm279 = vcmp.ne.f32.partialorder %v270, 0.0
          %vm280 = vmand %vm262, %vm279
          %v281 = vsel %vm280, %v270, 1.0
          %v282 = vlaneseq
          %v283 = vand.u32 %v282, 127
          %v284 = vstv %s176
          %vm285 = vcmp.gt.s32.totalorder %v283, %v284
          %v286 = vsel %vm285, %v270, 0.0
          %v287 = vlaneseq
          %v288 = vshrl.u32 %v287, 7
          %v289 = vmov %v288
          %v290 = vld [vmem:[%s129] sm:$0xff]
          %v292 = vstv %s176
          %vm293 = vcmp.gt.s32.totalorder %v289, %v292
          %v294 = vsel %vm293, %v281, 1.0
          %v295 = vrcp.pop %v294
          %v296 = vmul.f32 %v290, %v295
          %vm297 = vmand %vm293, %vm262
          %v298 = vsel %vm297, %v296, 0.0
          %299 = vadd.xlane.f32.xlu0 %v298
          %v300 = vpop.xlane.xlu0 %299
          %v301 = vmul.f32 %v300, %v286
          %v302 = vsub.f32 %v296, %v301
          %303 = vst [vmem:[%s129] sm:$0xff] %v302
          %s304 = scalar_lea.vmem %s129, 8 [#allocation1]
          %v305 = vld [vmem:[%s304] sm:$0xff]
          %v306 = vadd.s32 %v289, 8
          %v307 = vstv %s176
          %vm308 = vcmp.gt.s32.totalorder %v306, %v307
          %v309 = vsel %vm308, %v281, 1.0
          %v310 = vrcp.pop %v309
          %v311 = vmul.f32 %v305, %v310
          %vm312 = vmand %vm308, %vm262
          %v313 = vsel %vm312, %v311, 0.0
          %314 = vadd.xlane.f32.xlu0 %v313
          %v315 = vpop.xlane.xlu0 %314
          %v316 = vmul.f32 %v315, %v286
          %v317 = vsub.f32 %v311, %v316
          %318 = vst [vmem:[%s304] sm:$0xff] %v317
          %s319 = scalar_lea.vmem %s129, 16 [#allocation1]
          %v320 = vld [vmem:[%s319] sm:$0xff]
          %v321 = vadd.s32 %v289, 16
          %v322 = vstv %s176
          %vm323 = vcmp.gt.s32.totalorder %v321, %v322
          %v324 = vsel %vm323, %v281, 1.0
          %v325 = vrcp.pop %v324
          %v326 = vmul.f32 %v320, %v325
          %vm327 = vmand %vm323, %vm262
          %v328 = vsel %vm327, %v326, 0.0
          %329 = vadd.xlane.f32.xlu0 %v328
          %v330 = vpop.xlane.xlu0 %329
          %v331 = vmul.f32 %v330, %v286
          %v332 = vsub.f32 %v326, %v331
          %333 = vst [vmem:[%s319] sm:$0xff] %v332
        $region51: #{custom-call.11} parent=38 // loop_footer
          %s180 = sadd.s32 1, %s176
        $region52: #{custom-call.11} parent=38 // loop_footer_branch
          %175 = sbr.rel target = $region48
        $region53: #{custom-call.11} parent=38 // loop_exit
          _
        %v334 = vld [vmem:[#allocation7] sm:$0xff]
        %s335 = scalar_lea.vmem [#allocation7], 8
        %v336 = vld [vmem:[%s335] sm:$0xff]
        %s337 = scalar_lea.vmem [#allocation7], 16
        %v338 = vld [vmem:[%s337] sm:$0xff]
        %s339 = scalar_lea.vmem [#allocation7], 24
        %s340 = scalar_lea.vmem [#allocation7], 32
        %s341 = scalar_lea.vmem [#allocation7], 40
        %s342 = scalar_lea.vmem [#allocation7], 48
        %s343 = scalar_lea.vmem [#allocation7], 56
        %s344 = scalar_lea.vmem [#allocation7], 64
        %s345 = scalar_lea.vmem [#allocation7], 72
        %s346 = scalar_lea.vmem [#allocation7], 80
        %s347 = scalar_lea.vmem [#allocation7], 88
        %s348 = scalar_lea.vmem [#allocation7], 96
        %s349 = scalar_lea.vmem [#allocation7], 104
        %s350 = scalar_lea.vmem [#allocation7], 112
        %s351 = scalar_lea.vmem [#allocation7], 120
        %352 = vxpose.xlu0.b32.start [1/16] %v334, 128
        %353 = vxpose.xlu0.b32.cont [2/16] %v336, 128
        %354 = vxpose.xlu0.b32.cont [3/16] %v338, 128
        %355 = vxpose.xlu0.b32.cont [4/16] 0, 128
        %356 = vxpose.xlu0.b32.cont [5/16] 0, 128
        %357 = vxpose.xlu0.b32.cont [6/16] 0, 128
        %358 = vxpose.xlu0.b32.cont [7/16] 0, 128
        %359 = vxpose.xlu0.b32.cont [8/16] 0, 128
        %360 = vxpose.xlu0.b32.cont [9/16] 0, 128
        %361 = vxpose.xlu0.b32.cont [10/16] 0, 128
        %362 = vxpose.xlu0.b32.cont [11/16] 0, 128
        %363 = vxpose.xlu0.b32.cont [12/16] 0, 128
        %364 = vxpose.xlu0.b32.cont [13/16] 0, 128
        %365 = vxpose.xlu0.b32.cont [14/16] 0, 128
        %366 = vxpose.xlu0.b32.cont [15/16] 0, 128
        %367 = vxpose.xlu0.b32.end [16/16] 0, 128
        %v368 = vpop.trf.xlu0
        %v369 = vpop.trf.xlu0
        %v370 = vpop.trf.xlu0
        %v371 = vpop.trf.xlu0
        %v372 = vpop.trf.xlu0
        %v373 = vpop.trf.xlu0
        %v374 = vpop.trf.xlu0
        %v375 = vpop.trf.xlu0
        %v376 = vpop.trf.xlu0
        %v377 = vpop.trf.xlu0
        %v378 = vpop.trf.xlu0
        %v379 = vpop.trf.xlu0
        %v380 = vpop.trf.xlu0
        %v381 = vpop.trf.xlu0
        %v382 = vpop.trf.xlu0
        %v383 = vpop.trf.xlu0
        %384 = vst [vmem:[%s158] sm:$0x1] %v368
        %s386 = sshllo.u32 0, 4
        %v388 = vld [vmem:[#allocation2] sm:%s386]
        %s389 = sshllo.u32 0, 4
        %390 = vst [vmem:[%s136] sm:%s389] %v388
        %s392 = sshllo.u32 0, 4
        %v394 = vld [vmem:[#allocation5] sm:%s392]
        %s395 = sshllo.u32 0, 4
        %396 = vst [vmem:[%s142] sm:%s395] %v394
        %s397 = sand.u32 %s14, 1
        %s398 = sand.u32 %s14, 1
        %s399 = smul.addr %s398, 24
        %s400 = scalar_lea.vmem [#allocation1], %s399
        %s401 = sand.u32 %s24, 1
        %s402 = scalar_lea.sflag [#allocation4], %s401
        %s403 = sand.u32 %s24, 1
        %s404 = smul.addr %s403, 4
        %s405 = scalar_lea.vmem [#allocation3], %s404
        %s406 = sand.u32 %s52, 1
        %s407 = sand.u32 %s52, 1
        %s408 = smul.addr %s407, 4
        %s409 = scalar_lea.vmem [#allocation6], %s408
        %s410 = smul.addr %s14, 24
        %s411 = scalar_lea.vmem %s1, %s410
        // Predicated region
        $region54: #{custom-call.11} parent=38 // pred_check
          _
        $region55: #{custom-call.11} parent=38 // pred_check_branch
          %413 = sbr.rel (0) target = $region57
        $region56: #{custom-call.11} parent=38 // pred_region
          // Predicated region
          $region58: #{custom-call.11} parent=56 // pred_check
            _
          $region59: #{custom-call.11} parent=56 // pred_check_branch
            %415 = sbr.rel (0) target = $region61
          $region60: #{custom-call.11} parent=56 // pred_region
            loop: start=0, step=1, limit=1
            $region62: #{custom-call.11} parent=60 // loop_pre_header
              _
            $region63: #{custom-call.11} parent=60 // loop_header
              %s417 = sphi 0, %s421
              %p418 = scmp.ge.s32.totalorder %s417, 1
              %s422 = sphi %s400, %s400
              %s423 = sphi %s411, %s411
            $region64: #{custom-call.11} parent=60 // loop_header_branch
              %420 = sbr.rel (%p418) target = $region68
            $region65: #{custom-call.11} parent=60 // loop_body
              %v424 = vld [vmem:[%s422] sm:$0xff]
              %425 = vst [vmem:[%s423] sm:$0xff] %v424
              %v426 = vld [vmem:[%s422 + $0x8] sm:$0xff]
              %427 = vst [vmem:[%s423 + $0x8] sm:$0xff] %v426
              %v428 = vld [vmem:[%s422 + $0x10] sm:$0xff]
              %429 = vst [vmem:[%s423 + $0x10] sm:$0xff] %v428
            $region66: #{custom-call.11} parent=60 // loop_footer
              %s421 = sadd.s32 1, %s417
            $region67: #{custom-call.11} parent=60 // loop_footer_branch
              %416 = sbr.rel target = $region63
            $region68: #{custom-call.11} parent=60 // loop_exit
              _
          $region61: #{custom-call.11} parent=56 // pred_fallthru
            _
          // Predicated region
          $region69: #{custom-call.11} parent=56 // pred_check
            _
          $region70: #{custom-call.11} parent=56 // pred_check_branch
            %431 = sbr.rel target = $region72
          $region71: #{custom-call.11} parent=56 // pred_region
            _
          $region72: #{custom-call.11} parent=56 // pred_fallthru
            _
        $region57: #{custom-call.11} parent=38 // pred_fallthru
          _
        %432 = vnop
        // Predicated region
        $region73: #{custom-call.11} parent=38 // pred_check
          %p433 = pneg %p34
        $region74: #{custom-call.11} parent=38 // pred_check_branch
          %435 = sbr.rel (%p433) target = $region76
        $region75: #{custom-call.11} parent=38 // pred_region
          %s436 = sshrl.u32 %s14, 3
          %s438 = ssub.s32 64, 64
          %439 = vsyncadd %s402, %s438
          %s440 = smul.addr %s436, 64
          %s441 = scalar_lea.hbm %s2, %s440
          %s443 = sshll.u32 %s405, 4
          %s444 = int_to_ptr.vmem [resolvable:$true] %s443
          %446 = dma.vmem_to_hbm [thread:$0]  %s444, 64, %s441, %s402
        $region76: #{custom-call.11} parent=38 // pred_fallthru
          _
        // Predicated region
        $region77: #{custom-call.11} parent=38 // pred_check
          %p447 = pneg %p62
        $region78: #{custom-call.11} parent=38 // pred_check_branch
          %449 = sbr.rel (%p447) target = $region80
        $region79: #{custom-call.11} parent=38 // pred_region
          %s450 = sshrl.u32 %s14, 3
          %s451 = smul.addr %s450, 4
          %s452 = scalar_lea.vmem %s3, %s451
          // Predicated region
          $region81: #{custom-call.11} parent=79 // pred_check
            _
          $region82: #{custom-call.11} parent=79 // pred_check_branch
            %454 = sbr.rel (0) target = $region84
          $region83: #{custom-call.11} parent=79 // pred_region
            // Predicated region
            $region85: #{custom-call.11} parent=83 // pred_check
              _
            $region86: #{custom-call.11} parent=83 // pred_check_branch
              %456 = sbr.rel target = $region88
            $region87: #{custom-call.11} parent=83 // pred_region
              // Predicated region
              $region100: #{custom-call.11} parent=87 // pred_check
                _
              $region101: #{custom-call.11} parent=87 // pred_check_branch
                %471 = sbr.rel (0) target = $region103
              $region102: #{custom-call.11} parent=87 // pred_region
                loop: start=0, step=1, limit=1
                $region104: #{custom-call.11} parent=102 // loop_pre_header
                  _
                $region105: #{custom-call.11} parent=102 // loop_header
                  %s474 = sphi 0, %s478
                  %p475 = scmp.ge.s32.totalorder %s474, 1
                  %s479 = sphi %s409, %s409
                  %s480 = sphi %s452, %s452
                $region106: #{custom-call.11} parent=102 // loop_header_branch
                  %477 = sbr.rel (%p475) target = $region110
                $region107: #{custom-call.11} parent=102 // loop_body
                  %v481 = vld [vmem:[%s479] sm:$0xf]
                  %482 = vst [vmem:[%s480] sm:$0xf] %v481
                $region108: #{custom-call.11} parent=102 // loop_footer
                  %s478 = sadd.s32 1, %s474
                $region109: #{custom-call.11} parent=102 // loop_footer_branch
                  %473 = sbr.rel target = $region105
                $region110: #{custom-call.11} parent=102 // loop_exit
                  _
              $region103: #{custom-call.11} parent=87 // pred_fallthru
                _
            $region88: #{custom-call.11} parent=83 // pred_fallthru
              _
            // Predicated region
            $region89: #{custom-call.11} parent=83 // pred_check
              _
            $region90: #{custom-call.11} parent=83 // pred_check_branch
              %458 = sbr.rel (0) target = $region92
            $region91: #{custom-call.11} parent=83 // pred_region
              loop: start=0, step=1, limit=1
              $region93: #{custom-call.11} parent=91 // loop_pre_header
                _
              $region94: #{custom-call.11} parent=91 // loop_header
                %s461 = sphi 0, %s465
                %p462 = scmp.ge.s32.totalorder %s461, 1
                %s466 = sphi %s409, %s409
                %s467 = sphi %s452, %s452
              $region95: #{custom-call.11} parent=91 // loop_header_branch
                %464 = sbr.rel (%p462) target = $region99
              $region96: #{custom-call.11} parent=91 // loop_body
                %v468 = vld [vmem:[%s466] sm:$0xf]
                %469 = vst [vmem:[%s467] sm:$0xf] %v468
              $region97: #{custom-call.11} parent=91 // loop_footer
                %s465 = sadd.s32 1, %s461
              $region98: #{custom-call.11} parent=91 // loop_footer_branch
                %460 = sbr.rel target = $region94
              $region99: #{custom-call.11} parent=91 // loop_exit
                _
            $region92: #{custom-call.11} parent=83 // pred_fallthru
              _
          $region84: #{custom-call.11} parent=79 // pred_fallthru
            _
          %483 = vnop
        $region80: #{custom-call.11} parent=38 // pred_fallthru
          _
      $region39: #{custom-call.11} parent=5 // pred_fallthru
        _
      %p484 = scmp.le.s32.totalorder 2, %s9
      // Predicated region
      $region111: #{custom-call.11} parent=5 // pred_check
        %p485 = pneg %p484
      $region112: #{custom-call.11} parent=5 // pred_check_branch
        %487 = sbr.rel (%p485) target = $region114
      $region113: #{custom-call.11} parent=5 // pred_region
        %s488 = ssub.s32 %s9, 2
        %s489 = sand.u32 %s15, 1
        %s490 = sand.u32 %s15, 1
        %s491 = smul.addr %s490, 24
        %s492 = scalar_lea.vmem [#allocation1], %s491
        // Predicated region
        $region115: #{custom-call.11} parent=113 // pred_check
          %p493 = pneg %p40
        $region116: #{custom-call.11} parent=113 // pred_check_branch
          %495 = sbr.rel (%p493) target = $region118
        $region117: #{custom-call.11} parent=113 // pred_region
          %s496 = sand.u32 %s25, 1
          %s497 = scalar_lea.sflag [#allocation4], %s496
          %s498 = sand.u32 %s25, 1
          %s499 = smul.addr %s498, 4
          %s500 = scalar_lea.vmem [#allocation3], %s499
          %501 = dma.done %s497, 64
        $region118: #{custom-call.11} parent=113 // pred_fallthru
          _
        // Predicated region
        $region119: #{custom-call.11} parent=113 // pred_check
          %p502 = pneg %p68
        $region120: #{custom-call.11} parent=113 // pred_check_branch
          %504 = sbr.rel (%p502) target = $region122
        $region121: #{custom-call.11} parent=113 // pred_region
          %s505 = sand.u32 %s53, 1
          %s506 = sand.u32 %s53, 1
          %s507 = smul.addr %s506, 4
          %s508 = scalar_lea.vmem [#allocation6], %s507
        $region122: #{custom-call.11} parent=113 // pred_fallthru
          _
      $region114: #{custom-call.11} parent=5 // pred_fallthru
        _
    $region6: #{custom-call.11} parent=1 // loop_footer
      %s13 = sadd.s32 1, %s9
    $region7: #{custom-call.11} parent=1 // loop_footer_branch
      %8 = sbr.rel target = $region3
    $region8: #{custom-call.11} parent=1 // loop_exit
      _
    %509 = vsyncpa [#allocation4], 1
    %s510 = scalar_lea.sflag [#allocation4], 1
    %511 = vsyncpa %s510, 1

// kernel: custom-call.13
$region0: #{custom-call.13}
  %s0 = inlined_call_operand.vmem [shape: f32[4,1,20,20], index: 0, kind: input, shape index: {}]
  %s1 = inlined_call_operand.vmem [shape: f32[4,1,20,20], index: 1, kind: output, shape index: {}]
  $region1: #{custom-call.13} parent=0
    #allocation0 [shape = 'u8[24576]{0}', space=vmem, size = 0x6000, scoped, tag = 'operand span for operand 0']
    #allocation1 [shape = 'u8[24576]{0}', space=vmem, size = 0x6000, scoped, tag = 'operand span for operand 1']
    loop: start=0, step=1, limit=6
    $region2: #{custom-call.13} parent=1 // loop_pre_header
      _
    $region3: #{custom-call.13} parent=1 // loop_header
      %s3 = sphi 0, %s7
      %p4 = scmp.ge.s32.totalorder %s3, 6
      %s10 = sphi 0, %s36
      %s11 = sphi 0, %s32
      %s12 = sphi 0, %s28
      %s13 = sphi 0, %s24
      %s14 = sphi 0, %s10
      %s15 = sphi 0, %s11
      %s16 = sphi 0, %s12
      %s17 = sphi 0, %s13
      %s18 = sphi 0, %s14
      %s19 = sphi 0, %s15
      %s20 = sphi 0, %s16
      %s21 = sphi 0, %s17
    $region4: #{custom-call.13} parent=1 // loop_header_branch
      %6 = sbr.rel (%p4) target = $region8
    $region5: #{custom-call.13} parent=1 // loop_body
      %s8 = ssub.s32 %s3, 1
      %s9 = ssub.s32 %s3, 2
      %s22 = sadd.s32 1, %s13
      %p23 = scmp.ge.s32.totalorder %s22, 1
      %s24 = scalar_select %p23, 0, %s22
      %s25 = sadd.s32 1, %s12
      %s26 = scalar_select %p23, %s25, %s12
      %p27 = scmp.ge.s32.totalorder %s26, 1
      %s28 = scalar_select %p27, 0, %s26
      %s29 = sadd.s32 1, %s11
      %s30 = scalar_select %p27, %s29, %s11
      %p31 = scmp.ge.s32.totalorder %s30, 1
      %s32 = scalar_select %p31, 0, %s30
      %s33 = sadd.s32 1, %s10
      %s34 = scalar_select %p31, %s33, %s10
      %p35 = scmp.ge.s32.totalorder %s34, 4
      %s36 = scalar_select %p35, 0, %s34
      %p37 = scmp.le.s32.totalorder 1, %s3
      %p38 = scmp.lt.s32.totalorder %s3, 5
      %p39 = pnand %p37, %p38
      %p40 = pneg %p39
      // Predicated region
      $region9: #{custom-call.13} parent=5 // pred_check
        _
      $region10: #{custom-call.13} parent=5 // pred_check_branch
        %42 = sbr.rel (%p39) target = $region12
      $region11: #{custom-call.13} parent=5 // pred_region
        %s43 = ssub.s32 %s3, 1
      $region12: #{custom-call.13} parent=5 // pred_fallthru
        _
      %p44 = scmp.lt.s32.totalorder %s3, 4
      // Predicated region
      $region13: #{custom-call.13} parent=5 // pred_check
        %p45 = pneg %p44
      $region14: #{custom-call.13} parent=5 // pred_check_branch
        %47 = sbr.rel (%p45) target = $region16
      $region15: #{custom-call.13} parent=5 // pred_region
        %s48 = sand.u32 %s3, 1
        %s49 = sand.u32 %s3, 1
        %s50 = smul.addr %s49, 24
        %s51 = scalar_lea.vmem [#allocation0], %s50
        %s52 = sadd.s32 %s13, %s12
        %s53 = smul.addr %s11, 3
        %s54 = sadd.s32 %s52, %s53
        %s55 = smul.addr %s10, 3
        %s56 = sadd.s32 %s54, %s55
        %s57 = smul.addr %s56, 8
        %s58 = scalar_lea.vmem %s0, %s57
        // Predicated region
        $region17: #{custom-call.13} parent=15 // pred_check
          _
        $region18: #{custom-call.13} parent=15 // pred_check_branch
          %60 = sbr.rel (0) target = $region20
        $region19: #{custom-call.13} parent=15 // pred_region
          // Predicated region
          $region21: #{custom-call.13} parent=19 // pred_check
            _
          $region22: #{custom-call.13} parent=19 // pred_check_branch
            %62 = sbr.rel (0) target = $region24
          $region23: #{custom-call.13} parent=19 // pred_region
            // Predicated region
            $region36: #{custom-call.13} parent=23 // pred_check
              _
            $region37: #{custom-call.13} parent=23 // pred_check_branch
              %81 = sbr.rel (0) target = $region39
            $region38: #{custom-call.13} parent=23 // pred_region
              loop: start=0, step=1, limit=1
              $region40: #{custom-call.13} parent=38 // loop_pre_header
                _
              $region41: #{custom-call.13} parent=38 // loop_header
                %s83 = sphi 0, %s87
                %p84 = scmp.ge.s32.totalorder %s83, 1
                %s88 = sphi %s58, %s58
                %s89 = sphi %s51, %s51
              $region42: #{custom-call.13} parent=38 // loop_header_branch
                %86 = sbr.rel (%p84) target = $region46
              $region43: #{custom-call.13} parent=38 // loop_body
                %v90 = vld [vmem:[%s88] sm:$0xff]
                %91 = vst [vmem:[%s89] sm:$0xff] %v90
                %v92 = vld [vmem:[%s88 + $0x8] sm:$0xff]
                %93 = vst [vmem:[%s89 + $0x8] sm:$0xff] %v92
                %v94 = vld [vmem:[%s88 + $0x10] sm:$0xff]
                %95 = vst [vmem:[%s89 + $0x10] sm:$0xff] %v94
              $region44: #{custom-call.13} parent=38 // loop_footer
                %s87 = sadd.s32 1, %s83
              $region45: #{custom-call.13} parent=38 // loop_footer_branch
                %82 = sbr.rel target = $region41
              $region46: #{custom-call.13} parent=38 // loop_exit
                _
            $region39: #{custom-call.13} parent=23 // pred_fallthru
              _
            // Predicated region
            $region47: #{custom-call.13} parent=23 // pred_check
              _
            $region48: #{custom-call.13} parent=23 // pred_check_branch
              %97 = sbr.rel target = $region50
            $region49: #{custom-call.13} parent=23 // pred_region
              _
            $region50: #{custom-call.13} parent=23 // pred_fallthru
              _
          $region24: #{custom-call.13} parent=19 // pred_fallthru
            _
          // Predicated region
          $region25: #{custom-call.13} parent=19 // pred_check
            _
          $region26: #{custom-call.13} parent=19 // pred_check_branch
            %64 = sbr.rel target = $region28
          $region27: #{custom-call.13} parent=19 // pred_region
            loop: start=0, step=1, limit=1
            $region29: #{custom-call.13} parent=27 // loop_pre_header
              _
            $region30: #{custom-call.13} parent=27 // loop_header
              %s67 = sphi 0, %s71
              %p68 = scmp.ge.s32.totalorder %s67, 1
              %s72 = sphi %s58, %s58
              %s73 = sphi %s51, %s51
            $region31: #{custom-call.13} parent=27 // loop_header_branch
              %70 = sbr.rel (%p68) target = $region35
            $region32: #{custom-call.13} parent=27 // loop_body
              %v74 = vld [vmem:[%s72] sm:$0xff]
              %75 = vst [vmem:[%s73] sm:$0xff] %v74
              %v76 = vld [vmem:[%s72 + $0x8] sm:$0xff]
              %77 = vst [vmem:[%s73 + $0x8] sm:$0xff] %v76
              %v78 = vld [vmem:[%s72 + $0x10] sm:$0xff]
              %79 = vst [vmem:[%s73 + $0x10] sm:$0xff] %v78
            $region33: #{custom-call.13} parent=27 // loop_footer
              %s71 = sadd.s32 1, %s67
            $region34: #{custom-call.13} parent=27 // loop_footer_branch
              %66 = sbr.rel target = $region30
            $region35: #{custom-call.13} parent=27 // loop_exit
              _
          $region28: #{custom-call.13} parent=19 // pred_fallthru
            _
        $region20: #{custom-call.13} parent=15 // pred_fallthru
          _
        %98 = vnop
      $region16: #{custom-call.13} parent=5 // pred_fallthru
        _
      %p99 = scmp.le.s32.totalorder 1, %s3
      %p100 = scmp.lt.s32.totalorder %s3, 5
      %p101 = pnand %p99, %p100
      %p102 = pneg %p101
      // Predicated region
      $region51: #{custom-call.13} parent=5 // pred_check
        _
      $region52: #{custom-call.13} parent=5 // pred_check_branch
        %104 = sbr.rel (%p101) target = $region54
      $region53: #{custom-call.13} parent=5 // pred_region
        #allocation2 [shape = 'f32[20,20]{1,0}', space=vmem, size = 0x3000, scoped, tag = 'rescaled input a']
        %s105 = ssub.s32 %s3, 1
        %s106 = sand.u32 %s8, 1
        %s107 = sand.u32 %s8, 1
        %s108 = smul.addr %s107, 24
        %s109 = scalar_lea.vmem [#allocation0], %s108
        %s110 = sand.u32 %s8, 1
        %s111 = sand.u32 %s8, 1
        %s112 = smul.addr %s111, 24
        %s113 = scalar_lea.vmem [#allocation0], %s112
        %s114 = sand.u32 %s8, 1
        %s115 = sand.u32 %s8, 1
        %s116 = smul.addr %s115, 24
        %s117 = scalar_lea.vmem [#allocation1], %s116
        %v118 = vlaneseq
        %v119 = vand.u32 %v118, 127
        %vm120 = vcmp.lt.s32.totalorder %v119, 20
        %v121 = vlaneseq
        %v122 = vshrl.u32 %v121, 7
        %vm124 = vcmp.eq.s32.totalorder %v122, %v119
        %v125 = vld [vmem:[%s109] sm:$0xff]
        %v126 = vsel %vm124, %v125, 0.0
        %127 = vadd.xlane.f32.xlu0 %v126
        %v128 = vpop.xlane.xlu0 %127
        %vm129 = vcmp.ge.s32.totalorder %v122, %v119
        %vm130 = vmand %vm129, %vm120
        %v131 = vsel %vm130, %v125, 0.0
        %v132 = vrcp.pop %v128
        %v133 = vmul.f32 %v131, %v132
        %134 = vst [vmem:[#allocation2] sm:$0xff] %v133
        %s135 = scalar_lea.vmem %s109, 8 [#allocation0]
        %s136 = scalar_lea.vmem [#allocation2], 8
        %v137 = vlaneseq
        %v138 = vshrl.u32 %v137, 7
        %v139 = vadd.s32 %v138, 8
        %vm140 = vcmp.eq.s32.totalorder %v139, %v119
        %v141 = vld [vmem:[%s135] sm:$0xff]
        %v142 = vsel %vm140, %v141, 0.0
        %143 = vadd.xlane.f32.xlu0 %v142
        %v144 = vpop.xlane.xlu0 %143
        %vm145 = vcmp.ge.s32.totalorder %v139, %v119
        %vm146 = vmand %vm145, %vm120
        %v147 = vsel %vm146, %v141, 0.0
        %v148 = vrcp.pop %v144
        %v149 = vmul.f32 %v147, %v148
        %150 = vst [vmem:[%s136] sm:$0xff] %v149
        %s151 = scalar_lea.vmem %s109, 16 [#allocation0]
        %s152 = scalar_lea.vmem [#allocation2], 16
        %v153 = vlaneseq
        %v154 = vshrl.u32 %v153, 7
        %v155 = vadd.s32 %v154, 16
        %vm156 = vcmp.eq.s32.totalorder %v155, %v119
        %v157 = vld [vmem:[%s151] sm:$0xff]
        %v158 = vsel %vm156, %v157, 0.0
        %159 = vadd.xlane.f32.xlu0 %v158
        %v160 = vpop.xlane.xlu0 %159
        %vm161 = vcmp.ge.s32.totalorder %v155, %v119
        %vm162 = vmand %vm161, %vm120
        %v163 = vsel %vm162, %v157, 0.0
        %v164 = vrcp.pop %v160
        %v165 = vmul.f32 %v163, %v164
        %166 = vst [vmem:[%s152] sm:$0xff] %v165
        %v167 = vlaneseq
        %v168 = vand.u32 %v167, 127
        %v169 = vlaneseq
        %v170 = vshrl.u32 %v169, 7
        %vm172 = vcmp.eq.s32.totalorder %v168, %v170
        %v173 = vlaneseq
        %v174 = vand.u32 %v173, 127
        %vm175 = vcmp.eq.s32.totalorder %v174, 0
        %v176 = vsel %vm175, 1.0, -1.0
        %v177 = vsel %vm172, %v176, 0.0
        %v178 = vlaneseq
        %v179 = vand.u32 %v178, 127
        %v180 = vlaneseq
        %v181 = vshrl.u32 %v180, 7
        %v182 = vadd.s32 %v181, 8
        %vm183 = vcmp.eq.s32.totalorder %v179, %v182
        %v184 = vsel %vm183, -1.0, 0.0
        %v185 = vlaneseq
        %v186 = vand.u32 %v185, 127
        %v187 = vlaneseq
        %v188 = vshrl.u32 %v187, 7
        %v189 = vadd.s32 %v188, 16
        %vm190 = vcmp.eq.s32.totalorder %v186, %v189
        %v191 = vsel %vm190, -1.0, 0.0
        %s192 = scalar_lea.vmem [#allocation2], 1
        %v193 = vld [vmem:[%s192] ss:$0 sm:$0xff]
        %v194 = vxor.u32 %v193, 2147483648
        %v195 = vlaneseq
        %v196 = vand.u32 %v195, 127
        %vm197 = vcmp.eq.s32.totalorder %v196, 1
        %v198 = vmul.f32 %v194, %v177
        %199 = vadd.xlane.f32.xlu0 %v198
        %v200 = vpop.xlane.xlu0 %199
        %v201 = vsel %vm197, %v200, %v177
        %s202 = scalar_lea.vmem [#allocation2], 2
        %v203 = vld [vmem:[%s202] ss:$0 sm:$0xff]
        %v204 = vxor.u32 %v203, 2147483648
        %v205 = vlaneseq
        %v206 = vand.u32 %v205, 127
        %vm207 = vcmp.eq.s32.totalorder %v206, 2
        %v208 = vmul.f32 %v204, %v201
        %209 = vadd.xlane.f32.xlu0 %v208
        %v210 = vpop.xlane.xlu0 %209
        %v211 = vsel %vm207, %v210, %v201
        %s212 = scalar_lea.vmem [#allocation2], 3
        %v213 = vld [vmem:[%s212] ss:$0 sm:$0xff]
        %v214 = vxor.u32 %v213, 2147483648
        %v215 = vlaneseq
        %v216 = vand.u32 %v215, 127
        %vm217 = vcmp.eq.s32.totalorder %v216, 3
        %v218 = vmul.f32 %v214, %v211
        %219 = vadd.xlane.f32.xlu0 %v218
        %v220 = vpop.xlane.xlu0 %219
        %v221 = vsel %vm217, %v220, %v211
        %s222 = scalar_lea.vmem [#allocation2], 4
        %v223 = vld [vmem:[%s222] ss:$0 sm:$0xff]
        %v224 = vxor.u32 %v223, 2147483648
        %v225 = vlaneseq
        %v226 = vand.u32 %v225, 127
        %vm227 = vcmp.eq.s32.totalorder %v226, 4
        %v228 = vmul.f32 %v224, %v221
        %229 = vadd.xlane.f32.xlu0 %v228
        %v230 = vpop.xlane.xlu0 %229
        %v231 = vsel %vm227, %v230, %v221
        %s232 = scalar_lea.vmem [#allocation2], 5
        %v233 = vld [vmem:[%s232] ss:$0 sm:$0xff]
        %v234 = vxor.u32 %v233, 2147483648
        %v235 = vlaneseq
        %v236 = vand.u32 %v235, 127
        %vm237 = vcmp.eq.s32.totalorder %v236, 5
        %v238 = vmul.f32 %v234, %v231
        %239 = vadd.xlane.f32.xlu0 %v238
        %v240 = vpop.xlane.xlu0 %239
        %v241 = vsel %vm237, %v240, %v231
        %s242 = scalar_lea.vmem [#allocation2], 6
        %v243 = vld [vmem:[%s242] ss:$0 sm:$0xff]
        %v244 = vxor.u32 %v243, 2147483648
        %v245 = vlaneseq
        %v246 = vand.u32 %v245, 127
        %vm247 = vcmp.eq.s32.totalorder %v246, 6
        %v248 = vmul.f32 %v244, %v241
        %249 = vadd.xlane.f32.xlu0 %v248
        %v250 = vpop.xlane.xlu0 %249
        %v251 = vsel %vm247, %v250, %v241
        %s252 = scalar_lea.vmem [#allocation2], 7
        %v253 = vld [vmem:[%s252] ss:$0 sm:$0xff]
        %v254 = vxor.u32 %v253, 2147483648
        %v255 = vlaneseq
        %v256 = vand.u32 %v255, 127
        %vm257 = vcmp.eq.s32.totalorder %v256, 7
        %v258 = vmul.f32 %v254, %v251
        %259 = vadd.xlane.f32.xlu0 %v258
        %v260 = vpop.xlane.xlu0 %259
        %v261 = vsel %vm257, %v260, %v251
        %s262 = scalar_lea.vmem [#allocation2], 8
        %v263 = vld [vmem:[%s262] ss:$0 sm:$0xff]
        %v264 = vxor.u32 %v263, 2147483648
        %v265 = vlaneseq
        %v266 = vand.u32 %v265, 127
        %vm267 = vcmp.eq.s32.totalorder %v266, 8
        %v268 = vmul.f32 %v264, %v261
        %269 = vadd.xlane.f32.xlu0 %v268
        %v270 = vpop.xlane.xlu0 %269
        %v271 = vsel %vm267, %v270, %v261
        %v272 = vmul.f32 %v264, %v184
        %273 = vadd.xlane.f32.xlu0 %v272
        %v274 = vpop.xlane.xlu0 %273
        %v275 = vsel %vm267, %v274, %v184
        %s276 = scalar_lea.vmem [#allocation2], 9
        %v277 = vld [vmem:[%s276] ss:$0 sm:$0xff]
        %v278 = vxor.u32 %v277, 2147483648
        %v279 = vlaneseq
        %v280 = vand.u32 %v279, 127
        %vm281 = vcmp.eq.s32.totalorder %v280, 9
        %v282 = vmul.f32 %v278, %v271
        %283 = vadd.xlane.f32.xlu0 %v282
        %v284 = vpop.xlane.xlu0 %283
        %v285 = vsel %vm281, %v284, %v271
        %v286 = vmul.f32 %v278, %v275
        %287 = vadd.xlane.f32.xlu0 %v286
        %v288 = vpop.xlane.xlu0 %287
        %v289 = vsel %vm281, %v288, %v275
        %s290 = scalar_lea.vmem [#allocation2], 10
        %v291 = vld [vmem:[%s290] ss:$0 sm:$0xff]
        %v292 = vxor.u32 %v291, 2147483648
        %v293 = vlaneseq
        %v294 = vand.u32 %v293, 127
        %vm295 = vcmp.eq.s32.totalorder %v294, 10
        %v296 = vmul.f32 %v292, %v285
        %297 = vadd.xlane.f32.xlu0 %v296
        %v298 = vpop.xlane.xlu0 %297
        %v299 = vsel %vm295, %v298, %v285
        %v300 = vmul.f32 %v292, %v289
        %301 = vadd.xlane.f32.xlu0 %v300
        %v302 = vpop.xlane.xlu0 %301
        %v303 = vsel %vm295, %v302, %v289
        %s304 = scalar_lea.vmem [#allocation2], 11
        %v305 = vld [vmem:[%s304] ss:$0 sm:$0xff]
        %v306 = vxor.u32 %v305, 2147483648
        %v307 = vlaneseq
        %v308 = vand.u32 %v307, 127
        %vm309 = vcmp.eq.s32.totalorder %v308, 11
        %v310 = vmul.f32 %v306, %v299
        %311 = vadd.xlane.f32.xlu0 %v310
        %v312 = vpop.xlane.xlu0 %311
        %v313 = vsel %vm309, %v312, %v299
        %v314 = vmul.f32 %v306, %v303
        %315 = vadd.xlane.f32.xlu0 %v314
        %v316 = vpop.xlane.xlu0 %315
        %v317 = vsel %vm309, %v316, %v303
        %s318 = scalar_lea.vmem [#allocation2], 12
        %v319 = vld [vmem:[%s318] ss:$0 sm:$0xff]
        %v320 = vxor.u32 %v319, 2147483648
        %v321 = vlaneseq
        %v322 = vand.u32 %v321, 127
        %vm323 = vcmp.eq.s32.totalorder %v322, 12
        %v324 = vmul.f32 %v320, %v313
        %325 = vadd.xlane.f32.xlu0 %v324
        %v326 = vpop.xlane.xlu0 %325
        %v327 = vsel %vm323, %v326, %v313
        %v328 = vmul.f32 %v320, %v317
        %329 = vadd.xlane.f32.xlu0 %v328
        %v330 = vpop.xlane.xlu0 %329
        %v331 = vsel %vm323, %v330, %v317
        %s332 = scalar_lea.vmem [#allocation2], 13
        %v333 = vld [vmem:[%s332] ss:$0 sm:$0xff]
        %v334 = vxor.u32 %v333, 2147483648
        %v335 = vlaneseq
        %v336 = vand.u32 %v335, 127
        %vm337 = vcmp.eq.s32.totalorder %v336, 13
        %v338 = vmul.f32 %v334, %v327
        %339 = vadd.xlane.f32.xlu0 %v338
        %v340 = vpop.xlane.xlu0 %339
        %v341 = vsel %vm337, %v340, %v327
        %v342 = vmul.f32 %v334, %v331
        %343 = vadd.xlane.f32.xlu0 %v342
        %v344 = vpop.xlane.xlu0 %343
        %v345 = vsel %vm337, %v344, %v331
        %s346 = scalar_lea.vmem [#allocation2], 14
        %v347 = vld [vmem:[%s346] ss:$0 sm:$0xff]
        %v348 = vxor.u32 %v347, 2147483648
        %v349 = vlaneseq
        %v350 = vand.u32 %v349, 127
        %vm351 = vcmp.eq.s32.totalorder %v350, 14
        %v352 = vmul.f32 %v348, %v341
        %353 = vadd.xlane.f32.xlu0 %v352
        %v354 = vpop.xlane.xlu0 %353
        %v355 = vsel %vm351, %v354, %v341
        %v356 = vmul.f32 %v348, %v345
        %357 = vadd.xlane.f32.xlu0 %v356
        %v358 = vpop.xlane.xlu0 %357
        %v359 = vsel %vm351, %v358, %v345
        %s360 = scalar_lea.vmem [#allocation2], 15
        %v361 = vld [vmem:[%s360] ss:$0 sm:$0xff]
        %v362 = vxor.u32 %v361, 2147483648
        %v363 = vlaneseq
        %v364 = vand.u32 %v363, 127
        %vm365 = vcmp.eq.s32.totalorder %v364, 15
        %v366 = vmul.f32 %v362, %v355
        %367 = vadd.xlane.f32.xlu0 %v366
        %v368 = vpop.xlane.xlu0 %367
        %v369 = vsel %vm365, %v368, %v355
        %v370 = vmul.f32 %v362, %v359
        %371 = vadd.xlane.f32.xlu0 %v370
        %v372 = vpop.xlane.xlu0 %371
        %v373 = vsel %vm365, %v372, %v359
        %s374 = scalar_lea.vmem [#allocation2], 16
        %v375 = vld [vmem:[%s374] ss:$0 sm:$0xff]
        %v376 = vxor.u32 %v375, 2147483648
        %v377 = vlaneseq
        %v378 = vand.u32 %v377, 127
        %vm379 = vcmp.eq.s32.totalorder %v378, 16
        %v380 = vmul.f32 %v376, %v369
        %381 = vadd.xlane.f32.xlu0 %v380
        %v382 = vpop.xlane.xlu0 %381
        %v383 = vsel %vm379, %v382, %v369
        %v384 = vmul.f32 %v376, %v373
        %385 = vadd.xlane.f32.xlu0 %v384
        %v386 = vpop.xlane.xlu0 %385
        %v387 = vsel %vm379, %v386, %v373
        %v388 = vmul.f32 %v376, %v191
        %389 = vadd.xlane.f32.xlu0 %v388
        %v390 = vpop.xlane.xlu0 %389
        %v391 = vsel %vm379, %v390, %v191
        %s392 = scalar_lea.vmem [#allocation2], 17
        %v393 = vld [vmem:[%s392] ss:$0 sm:$0xff]
        %v394 = vxor.u32 %v393, 2147483648
        %v395 = vlaneseq
        %v396 = vand.u32 %v395, 127
        %vm397 = vcmp.eq.s32.totalorder %v396, 17
        %v398 = vmul.f32 %v394, %v383
        %399 = vadd.xlane.f32.xlu0 %v398
        %v400 = vpop.xlane.xlu0 %399
        %v401 = vsel %vm397, %v400, %v383
        %v402 = vmul.f32 %v394, %v387
        %403 = vadd.xlane.f32.xlu0 %v402
        %v404 = vpop.xlane.xlu0 %403
        %v405 = vsel %vm397, %v404, %v387
        %v406 = vmul.f32 %v394, %v391
        %407 = vadd.xlane.f32.xlu0 %v406
        %v408 = vpop.xlane.xlu0 %407
        %v409 = vsel %vm397, %v408, %v391
        %s410 = scalar_lea.vmem [#allocation2], 18
        %v411 = vld [vmem:[%s410] ss:$0 sm:$0xff]
        %v412 = vxor.u32 %v411, 2147483648
        %v413 = vlaneseq
        %v414 = vand.u32 %v413, 127
        %vm415 = vcmp.eq.s32.totalorder %v414, 18
        %v416 = vmul.f32 %v412, %v401
        %417 = vadd.xlane.f32.xlu0 %v416
        %v418 = vpop.xlane.xlu0 %417
        %v419 = vsel %vm415, %v418, %v401
        %v420 = vmul.f32 %v412, %v405
        %421 = vadd.xlane.f32.xlu0 %v420
        %v422 = vpop.xlane.xlu0 %421
        %v423 = vsel %vm415, %v422, %v405
        %v424 = vmul.f32 %v412, %v409
        %425 = vadd.xlane.f32.xlu0 %v424
        %v426 = vpop.xlane.xlu0 %425
        %v427 = vsel %vm415, %v426, %v409
        %s428 = scalar_lea.vmem [#allocation2], 19
        %v429 = vld [vmem:[%s428] ss:$0 sm:$0xff]
        %v430 = vxor.u32 %v429, 2147483648
        %v431 = vlaneseq
        %v432 = vand.u32 %v431, 127
        %vm433 = vcmp.eq.s32.totalorder %v432, 19
        %v434 = vmul.f32 %v430, %v419
        %435 = vadd.xlane.f32.xlu0 %v434
        %v436 = vpop.xlane.xlu0 %435
        %v437 = vsel %vm433, %v436, %v419
        %v438 = vmul.f32 %v430, %v423
        %439 = vadd.xlane.f32.xlu0 %v438
        %v440 = vpop.xlane.xlu0 %439
        %v441 = vsel %vm433, %v440, %v423
        %v442 = vmul.f32 %v430, %v427
        %443 = vadd.xlane.f32.xlu0 %v442
        %v444 = vpop.xlane.xlu0 %443
        %v445 = vsel %vm433, %v444, %v427
        %v446 = vrcp.pop %v128
        %v447 = vmul.f32 %v437, %v446
        %vm448 = vweird.f32 %v128
        %v449 = vsel %vm448, %v437, %v447
        %450 = vst [vmem:[%s117] sm:$0xff] %v449
        %v451 = vrcp.pop %v144
        %v452 = vmul.f32 %v441, %v451
        %vm453 = vweird.f32 %v144
        %v454 = vsel %vm453, %v441, %v452
        %s455 = scalar_lea.vmem %s117, 8 [#allocation1]
        %456 = vst [vmem:[%s455] sm:$0xff] %v454
        %v457 = vrcp.pop %v160
        %v458 = vmul.f32 %v445, %v457
        %vm459 = vweird.f32 %v160
        %v460 = vsel %vm459, %v445, %v458
        %s461 = scalar_lea.vmem %s117, 16 [#allocation1]
        %462 = vst [vmem:[%s461] sm:$0xff] %v460
        %s463 = sand.u32 %s8, 1
        %s464 = sand.u32 %s8, 1
        %s465 = smul.addr %s464, 24
        %s466 = scalar_lea.vmem [#allocation1], %s465
        %s467 = sadd.s32 %s17, %s16
        %s468 = smul.addr %s15, 3
        %s469 = sadd.s32 %s467, %s468
        %s470 = smul.addr %s14, 3
        %s471 = sadd.s32 %s469, %s470
        %s472 = smul.addr %s471, 8
        %s473 = scalar_lea.vmem %s1, %s472
        // Predicated region
        $region55: #{custom-call.13} parent=53 // pred_check
          _
        $region56: #{custom-call.13} parent=53 // pred_check_branch
          %475 = sbr.rel (0) target = $region58
        $region57: #{custom-call.13} parent=53 // pred_region
          // Predicated region
          $region59: #{custom-call.13} parent=57 // pred_check
            _
          $region60: #{custom-call.13} parent=57 // pred_check_branch
            %477 = sbr.rel (0) target = $region62
          $region61: #{custom-call.13} parent=57 // pred_region
            // Predicated region
            $region74: #{custom-call.13} parent=61 // pred_check
              _
            $region75: #{custom-call.13} parent=61 // pred_check_branch
              %496 = sbr.rel (0) target = $region77
            $region76: #{custom-call.13} parent=61 // pred_region
              loop: start=0, step=1, limit=1
              $region78: #{custom-call.13} parent=76 // loop_pre_header
                _
              $region79: #{custom-call.13} parent=76 // loop_header
                %s498 = sphi 0, %s502
                %p499 = scmp.ge.s32.totalorder %s498, 1
                %s503 = sphi %s466, %s466
                %s504 = sphi %s473, %s473
              $region80: #{custom-call.13} parent=76 // loop_header_branch
                %501 = sbr.rel (%p499) target = $region84
              $region81: #{custom-call.13} parent=76 // loop_body
                %v505 = vld [vmem:[%s503] sm:$0xff]
                %506 = vst [vmem:[%s504] sm:$0xff] %v505
                %v507 = vld [vmem:[%s503 + $0x8] sm:$0xff]
                %508 = vst [vmem:[%s504 + $0x8] sm:$0xff] %v507
                %v509 = vld [vmem:[%s503 + $0x10] sm:$0xff]
                %510 = vst [vmem:[%s504 + $0x10] sm:$0xff] %v509
              $region82: #{custom-call.13} parent=76 // loop_footer
                %s502 = sadd.s32 1, %s498
              $region83: #{custom-call.13} parent=76 // loop_footer_branch
                %497 = sbr.rel target = $region79
              $region84: #{custom-call.13} parent=76 // loop_exit
                _
            $region77: #{custom-call.13} parent=61 // pred_fallthru
              _
            // Predicated region
            $region85: #{custom-call.13} parent=61 // pred_check
              _
            $region86: #{custom-call.13} parent=61 // pred_check_branch
              %512 = sbr.rel target = $region88
            $region87: #{custom-call.13} parent=61 // pred_region
              _
            $region88: #{custom-call.13} parent=61 // pred_fallthru
              _
          $region62: #{custom-call.13} parent=57 // pred_fallthru
            _
          // Predicated region
          $region63: #{custom-call.13} parent=57 // pred_check
            _
          $region64: #{custom-call.13} parent=57 // pred_check_branch
            %479 = sbr.rel target = $region66
          $region65: #{custom-call.13} parent=57 // pred_region
            loop: start=0, step=1, limit=1
            $region67: #{custom-call.13} parent=65 // loop_pre_header
              _
            $region68: #{custom-call.13} parent=65 // loop_header
              %s482 = sphi 0, %s486
              %p483 = scmp.ge.s32.totalorder %s482, 1
              %s487 = sphi %s466, %s466
              %s488 = sphi %s473, %s473
            $region69: #{custom-call.13} parent=65 // loop_header_branch
              %485 = sbr.rel (%p483) target = $region73
            $region70: #{custom-call.13} parent=65 // loop_body
              %v489 = vld [vmem:[%s487] sm:$0xff]
              %490 = vst [vmem:[%s488] sm:$0xff] %v489
              %v491 = vld [vmem:[%s487 + $0x8] sm:$0xff]
              %492 = vst [vmem:[%s488 + $0x8] sm:$0xff] %v491
              %v493 = vld [vmem:[%s487 + $0x10] sm:$0xff]
              %494 = vst [vmem:[%s488 + $0x10] sm:$0xff] %v493
            $region71: #{custom-call.13} parent=65 // loop_footer
              %s486 = sadd.s32 1, %s482
            $region72: #{custom-call.13} parent=65 // loop_footer_branch
              %481 = sbr.rel target = $region68
            $region73: #{custom-call.13} parent=65 // loop_exit
              _
          $region66: #{custom-call.13} parent=57 // pred_fallthru
            _
        $region58: #{custom-call.13} parent=53 // pred_fallthru
          _
        %513 = vnop
      $region54: #{custom-call.13} parent=5 // pred_fallthru
        _
      %p514 = scmp.le.s32.totalorder 2, %s3
      // Predicated region
      $region89: #{custom-call.13} parent=5 // pred_check
        %p515 = pneg %p514
      $region90: #{custom-call.13} parent=5 // pred_check_branch
        %517 = sbr.rel (%p515) target = $region92
      $region91: #{custom-call.13} parent=5 // pred_region
        %s518 = ssub.s32 %s3, 2
        %s519 = sand.u32 %s9, 1
        %s520 = sand.u32 %s9, 1
        %s521 = smul.addr %s520, 24
        %s522 = scalar_lea.vmem [#allocation1], %s521
      $region92: #{custom-call.13} parent=5 // pred_fallthru
        _
    $region6: #{custom-call.13} parent=1 // loop_footer
      %s7 = sadd.s32 1, %s3
    $region7: #{custom-call.13} parent=1 // loop_footer_branch
      %2 = sbr.rel target = $region3
    $region8: #{custom-call.13} parent=1 // loop_exit
      _

// kernel: custom-call.12
$region0: #{custom-call.12}
  %s0 = inlined_call_operand.vmem [shape: f32[4,1,20,20], index: 0, kind: input, shape index: {}]
  %s1 = inlined_call_operand.vmem [shape: f32[4,1,20,20], index: 1, kind: output, shape index: {}]
  $region1: #{custom-call.12} parent=0
    #allocation0 [shape = 'u8[24576]{0}', space=vmem, size = 0x6000, scoped, tag = 'operand span for operand 0']
    #allocation1 [shape = 'u8[24576]{0}', space=vmem, size = 0x6000, scoped, tag = 'operand span for operand 1']
    loop: start=0, step=1, limit=6
    $region2: #{custom-call.12} parent=1 // loop_pre_header
      _
    $region3: #{custom-call.12} parent=1 // loop_header
      %s3 = sphi 0, %s7
      %p4 = scmp.ge.s32.totalorder %s3, 6
      %s10 = sphi 0, %s36
      %s11 = sphi 0, %s32
      %s12 = sphi 0, %s28
      %s13 = sphi 0, %s24
      %s14 = sphi 0, %s10
      %s15 = sphi 0, %s11
      %s16 = sphi 0, %s12
      %s17 = sphi 0, %s13
      %s18 = sphi 0, %s14
      %s19 = sphi 0, %s15
      %s20 = sphi 0, %s16
      %s21 = sphi 0, %s17
    $region4: #{custom-call.12} parent=1 // loop_header_branch
      %6 = sbr.rel (%p4) target = $region8
    $region5: #{custom-call.12} parent=1 // loop_body
      %s8 = ssub.s32 %s3, 1
      %s9 = ssub.s32 %s3, 2
      %s22 = sadd.s32 1, %s13
      %p23 = scmp.ge.s32.totalorder %s22, 1
      %s24 = scalar_select %p23, 0, %s22
      %s25 = sadd.s32 1, %s12
      %s26 = scalar_select %p23, %s25, %s12
      %p27 = scmp.ge.s32.totalorder %s26, 1
      %s28 = scalar_select %p27, 0, %s26
      %s29 = sadd.s32 1, %s11
      %s30 = scalar_select %p27, %s29, %s11
      %p31 = scmp.ge.s32.totalorder %s30, 1
      %s32 = scalar_select %p31, 0, %s30
      %s33 = sadd.s32 1, %s10
      %s34 = scalar_select %p31, %s33, %s10
      %p35 = scmp.ge.s32.totalorder %s34, 4
      %s36 = scalar_select %p35, 0, %s34
      %p37 = scmp.le.s32.totalorder 1, %s3
      %p38 = scmp.lt.s32.totalorder %s3, 5
      %p39 = pnand %p37, %p38
      %p40 = pneg %p39
      // Predicated region
      $region9: #{custom-call.12} parent=5 // pred_check
        _
      $region10: #{custom-call.12} parent=5 // pred_check_branch
        %42 = sbr.rel (%p39) target = $region12
      $region11: #{custom-call.12} parent=5 // pred_region
        %s43 = ssub.s32 %s3, 1
      $region12: #{custom-call.12} parent=5 // pred_fallthru
        _
      %p44 = scmp.lt.s32.totalorder %s3, 4
      // Predicated region
      $region13: #{custom-call.12} parent=5 // pred_check
        %p45 = pneg %p44
      $region14: #{custom-call.12} parent=5 // pred_check_branch
        %47 = sbr.rel (%p45) target = $region16
      $region15: #{custom-call.12} parent=5 // pred_region
        %s48 = sand.u32 %s3, 1
        %s49 = sand.u32 %s3, 1
        %s50 = smul.addr %s49, 24
        %s51 = scalar_lea.vmem [#allocation0], %s50
        %s52 = sadd.s32 %s13, %s12
        %s53 = smul.addr %s11, 3
        %s54 = sadd.s32 %s52, %s53
        %s55 = smul.addr %s10, 3
        %s56 = sadd.s32 %s54, %s55
        %s57 = smul.addr %s56, 8
        %s58 = scalar_lea.vmem %s0, %s57
        // Predicated region
        $region17: #{custom-call.12} parent=15 // pred_check
          _
        $region18: #{custom-call.12} parent=15 // pred_check_branch
          %60 = sbr.rel (0) target = $region20
        $region19: #{custom-call.12} parent=15 // pred_region
          // Predicated region
          $region21: #{custom-call.12} parent=19 // pred_check
            _
          $region22: #{custom-call.12} parent=19 // pred_check_branch
            %62 = sbr.rel (0) target = $region24
          $region23: #{custom-call.12} parent=19 // pred_region
            // Predicated region
            $region36: #{custom-call.12} parent=23 // pred_check
              _
            $region37: #{custom-call.12} parent=23 // pred_check_branch
              %81 = sbr.rel (0) target = $region39
            $region38: #{custom-call.12} parent=23 // pred_region
              loop: start=0, step=1, limit=1
              $region40: #{custom-call.12} parent=38 // loop_pre_header
                _
              $region41: #{custom-call.12} parent=38 // loop_header
                %s83 = sphi 0, %s87
                %p84 = scmp.ge.s32.totalorder %s83, 1
                %s88 = sphi %s58, %s58
                %s89 = sphi %s51, %s51
              $region42: #{custom-call.12} parent=38 // loop_header_branch
                %86 = sbr.rel (%p84) target = $region46
              $region43: #{custom-call.12} parent=38 // loop_body
                %v90 = vld [vmem:[%s88] sm:$0xff]
                %91 = vst [vmem:[%s89] sm:$0xff] %v90
                %v92 = vld [vmem:[%s88 + $0x8] sm:$0xff]
                %93 = vst [vmem:[%s89 + $0x8] sm:$0xff] %v92
                %v94 = vld [vmem:[%s88 + $0x10] sm:$0xff]
                %95 = vst [vmem:[%s89 + $0x10] sm:$0xff] %v94
              $region44: #{custom-call.12} parent=38 // loop_footer
                %s87 = sadd.s32 1, %s83
              $region45: #{custom-call.12} parent=38 // loop_footer_branch
                %82 = sbr.rel target = $region41
              $region46: #{custom-call.12} parent=38 // loop_exit
                _
            $region39: #{custom-call.12} parent=23 // pred_fallthru
              _
            // Predicated region
            $region47: #{custom-call.12} parent=23 // pred_check
              _
            $region48: #{custom-call.12} parent=23 // pred_check_branch
              %97 = sbr.rel target = $region50
            $region49: #{custom-call.12} parent=23 // pred_region
              _
            $region50: #{custom-call.12} parent=23 // pred_fallthru
              _
          $region24: #{custom-call.12} parent=19 // pred_fallthru
            _
          // Predicated region
          $region25: #{custom-call.12} parent=19 // pred_check
            _
          $region26: #{custom-call.12} parent=19 // pred_check_branch
            %64 = sbr.rel target = $region28
          $region27: #{custom-call.12} parent=19 // pred_region
            loop: start=0, step=1, limit=1
            $region29: #{custom-call.12} parent=27 // loop_pre_header
              _
            $region30: #{custom-call.12} parent=27 // loop_header
              %s67 = sphi 0, %s71
              %p68 = scmp.ge.s32.totalorder %s67, 1
              %s72 = sphi %s58, %s58
              %s73 = sphi %s51, %s51
            $region31: #{custom-call.12} parent=27 // loop_header_branch
              %70 = sbr.rel (%p68) target = $region35
            $region32: #{custom-call.12} parent=27 // loop_body
              %v74 = vld [vmem:[%s72] sm:$0xff]
              %75 = vst [vmem:[%s73] sm:$0xff] %v74
              %v76 = vld [vmem:[%s72 + $0x8] sm:$0xff]
              %77 = vst [vmem:[%s73 + $0x8] sm:$0xff] %v76
              %v78 = vld [vmem:[%s72 + $0x10] sm:$0xff]
              %79 = vst [vmem:[%s73 + $0x10] sm:$0xff] %v78
            $region33: #{custom-call.12} parent=27 // loop_footer
              %s71 = sadd.s32 1, %s67
            $region34: #{custom-call.12} parent=27 // loop_footer_branch
              %66 = sbr.rel target = $region30
            $region35: #{custom-call.12} parent=27 // loop_exit
              _
          $region28: #{custom-call.12} parent=19 // pred_fallthru
            _
        $region20: #{custom-call.12} parent=15 // pred_fallthru
          _
        %98 = vnop
      $region16: #{custom-call.12} parent=5 // pred_fallthru
        _
      %p99 = scmp.le.s32.totalorder 1, %s3
      %p100 = scmp.lt.s32.totalorder %s3, 5
      %p101 = pnand %p99, %p100
      %p102 = pneg %p101
      // Predicated region
      $region51: #{custom-call.12} parent=5 // pred_check
        _
      $region52: #{custom-call.12} parent=5 // pred_check_branch
        %104 = sbr.rel (%p101) target = $region54
      $region53: #{custom-call.12} parent=5 // pred_region
        #allocation2 [shape = 'f32[20,20]{1,0}', space=vmem, size = 0x3000, scoped, tag = 'rescaled input a']
        %s105 = ssub.s32 %s3, 1
        %s106 = sand.u32 %s8, 1
        %s107 = sand.u32 %s8, 1
        %s108 = smul.addr %s107, 24
        %s109 = scalar_lea.vmem [#allocation0], %s108
        %s110 = sand.u32 %s8, 1
        %s111 = sand.u32 %s8, 1
        %s112 = smul.addr %s111, 24
        %s113 = scalar_lea.vmem [#allocation0], %s112
        %s114 = sand.u32 %s8, 1
        %s115 = sand.u32 %s8, 1
        %s116 = smul.addr %s115, 24
        %s117 = scalar_lea.vmem [#allocation1], %s116
        %v118 = vlaneseq
        %v119 = vand.u32 %v118, 127
        %vm120 = vcmp.lt.s32.totalorder %v119, 20
        %v121 = vlaneseq
        %v122 = vshrl.u32 %v121, 7
        %vm124 = vcmp.eq.s32.totalorder %v122, %v119
        %v125 = vld [vmem:[%s109] sm:$0xff]
        %v126 = vsel %vm124, %v125, 0.0
        %127 = vadd.xlane.f32.xlu0 %v126
        %v128 = vpop.xlane.xlu0 %127
        %vm129 = vcmp.le.s32.totalorder %v122, %v119
        %vm130 = vmand %vm129, %vm120
        %v131 = vsel %vm130, %v125, 0.0
        %v132 = vrcp.pop %v128
        %v133 = vmul.f32 %v131, %v132
        %134 = vst [vmem:[#allocation2] sm:$0xff] %v133
        %s135 = scalar_lea.vmem %s109, 8 [#allocation0]
        %s136 = scalar_lea.vmem [#allocation2], 8
        %v137 = vlaneseq
        %v138 = vshrl.u32 %v137, 7
        %v139 = vadd.s32 %v138, 8
        %vm140 = vcmp.eq.s32.totalorder %v139, %v119
        %v141 = vld [vmem:[%s135] sm:$0xff]
        %v142 = vsel %vm140, %v141, 0.0
        %143 = vadd.xlane.f32.xlu0 %v142
        %v144 = vpop.xlane.xlu0 %143
        %vm145 = vcmp.le.s32.totalorder %v139, %v119
        %vm146 = vmand %vm145, %vm120
        %v147 = vsel %vm146, %v141, 0.0
        %v148 = vrcp.pop %v144
        %v149 = vmul.f32 %v147, %v148
        %150 = vst [vmem:[%s136] sm:$0xff] %v149
        %s151 = scalar_lea.vmem %s109, 16 [#allocation0]
        %s152 = scalar_lea.vmem [#allocation2], 16
        %v153 = vlaneseq
        %v154 = vshrl.u32 %v153, 7
        %v155 = vadd.s32 %v154, 16
        %vm156 = vcmp.eq.s32.totalorder %v155, %v119
        %v157 = vld [vmem:[%s151] sm:$0xff]
        %v158 = vsel %vm156, %v157, 0.0
        %159 = vadd.xlane.f32.xlu0 %v158
        %v160 = vpop.xlane.xlu0 %159
        %vm161 = vcmp.le.s32.totalorder %v155, %v119
        %vm162 = vmand %vm161, %vm120
        %v163 = vsel %vm162, %v157, 0.0
        %v164 = vrcp.pop %v160
        %v165 = vmul.f32 %v163, %v164
        %166 = vst [vmem:[%s152] sm:$0xff] %v165
        %v167 = vlaneseq
        %v168 = vand.u32 %v167, 127
        %v169 = vlaneseq
        %v170 = vshrl.u32 %v169, 7
        %vm172 = vcmp.eq.s32.totalorder %v168, %v170
        %v173 = vsel %vm172, -1.0, 0.0
        %v174 = vlaneseq
        %v175 = vand.u32 %v174, 127
        %v176 = vlaneseq
        %v177 = vshrl.u32 %v176, 7
        %v178 = vadd.s32 %v177, 8
        %vm179 = vcmp.eq.s32.totalorder %v175, %v178
        %v180 = vsel %vm179, -1.0, 0.0
        %v181 = vlaneseq
        %v182 = vand.u32 %v181, 127
        %v183 = vlaneseq
        %v184 = vshrl.u32 %v183, 7
        %v185 = vadd.s32 %v184, 16
        %vm186 = vcmp.eq.s32.totalorder %v182, %v185
        %v187 = vlaneseq
        %v188 = vand.u32 %v187, 127
        %vm189 = vcmp.eq.s32.totalorder %v188, 19
        %v190 = vsel %vm189, 1.0, -1.0
        %v191 = vsel %vm186, %v190, 0.0
        %s192 = scalar_lea.vmem [#allocation2], 18
        %v193 = vld [vmem:[%s192] ss:$0 sm:$0xff]
        %v194 = vxor.u32 %v193, 2147483648
        %v195 = vlaneseq
        %v196 = vand.u32 %v195, 127
        %vm197 = vcmp.eq.s32.totalorder %v196, 18
        %v198 = vmul.f32 %v194, %v191
        %199 = vadd.xlane.f32.xlu0 %v198
        %v200 = vpop.xlane.xlu0 %199
        %v201 = vsel %vm197, %v200, %v191
        %s202 = scalar_lea.vmem [#allocation2], 17
        %v203 = vld [vmem:[%s202] ss:$0 sm:$0xff]
        %v204 = vxor.u32 %v203, 2147483648
        %v205 = vlaneseq
        %v206 = vand.u32 %v205, 127
        %vm207 = vcmp.eq.s32.totalorder %v206, 17
        %v208 = vmul.f32 %v204, %v201
        %209 = vadd.xlane.f32.xlu0 %v208
        %v210 = vpop.xlane.xlu0 %209
        %v211 = vsel %vm207, %v210, %v201
        %s212 = scalar_lea.vmem [#allocation2], 16
        %v213 = vld [vmem:[%s212] ss:$0 sm:$0xff]
        %v214 = vxor.u32 %v213, 2147483648
        %v215 = vlaneseq
        %v216 = vand.u32 %v215, 127
        %vm217 = vcmp.eq.s32.totalorder %v216, 16
        %v218 = vmul.f32 %v214, %v211
        %219 = vadd.xlane.f32.xlu0 %v218
        %v220 = vpop.xlane.xlu0 %219
        %v221 = vsel %vm217, %v220, %v211
        %s222 = scalar_lea.vmem [#allocation2], 15
        %v223 = vld [vmem:[%s222] ss:$0 sm:$0xff]
        %v224 = vxor.u32 %v223, 2147483648
        %v225 = vlaneseq
        %v226 = vand.u32 %v225, 127
        %vm227 = vcmp.eq.s32.totalorder %v226, 15
        %v228 = vmul.f32 %v224, %v180
        %229 = vadd.xlane.f32.xlu0 %v228
        %v230 = vpop.xlane.xlu0 %229
        %v231 = vsel %vm227, %v230, %v180
        %v232 = vmul.f32 %v224, %v221
        %233 = vadd.xlane.f32.xlu0 %v232
        %v234 = vpop.xlane.xlu0 %233
        %v235 = vsel %vm227, %v234, %v221
        %s236 = scalar_lea.vmem [#allocation2], 14
        %v237 = vld [vmem:[%s236] ss:$0 sm:$0xff]
        %v238 = vxor.u32 %v237, 2147483648
        %v239 = vlaneseq
        %v240 = vand.u32 %v239, 127
        %vm241 = vcmp.eq.s32.totalorder %v240, 14
        %v242 = vmul.f32 %v238, %v231
        %243 = vadd.xlane.f32.xlu0 %v242
        %v244 = vpop.xlane.xlu0 %243
        %v245 = vsel %vm241, %v244, %v231
        %v246 = vmul.f32 %v238, %v235
        %247 = vadd.xlane.f32.xlu0 %v246
        %v248 = vpop.xlane.xlu0 %247
        %v249 = vsel %vm241, %v248, %v235
        %s250 = scalar_lea.vmem [#allocation2], 13
        %v251 = vld [vmem:[%s250] ss:$0 sm:$0xff]
        %v252 = vxor.u32 %v251, 2147483648
        %v253 = vlaneseq
        %v254 = vand.u32 %v253, 127
        %vm255 = vcmp.eq.s32.totalorder %v254, 13
        %v256 = vmul.f32 %v252, %v245
        %257 = vadd.xlane.f32.xlu0 %v256
        %v258 = vpop.xlane.xlu0 %257
        %v259 = vsel %vm255, %v258, %v245
        %v260 = vmul.f32 %v252, %v249
        %261 = vadd.xlane.f32.xlu0 %v260
        %v262 = vpop.xlane.xlu0 %261
        %v263 = vsel %vm255, %v262, %v249
        %s264 = scalar_lea.vmem [#allocation2], 12
        %v265 = vld [vmem:[%s264] ss:$0 sm:$0xff]
        %v266 = vxor.u32 %v265, 2147483648
        %v267 = vlaneseq
        %v268 = vand.u32 %v267, 127
        %vm269 = vcmp.eq.s32.totalorder %v268, 12
        %v270 = vmul.f32 %v266, %v259
        %271 = vadd.xlane.f32.xlu0 %v270
        %v272 = vpop.xlane.xlu0 %271
        %v273 = vsel %vm269, %v272, %v259
        %v274 = vmul.f32 %v266, %v263
        %275 = vadd.xlane.f32.xlu0 %v274
        %v276 = vpop.xlane.xlu0 %275
        %v277 = vsel %vm269, %v276, %v263
        %s278 = scalar_lea.vmem [#allocation2], 11
        %v279 = vld [vmem:[%s278] ss:$0 sm:$0xff]
        %v280 = vxor.u32 %v279, 2147483648
        %v281 = vlaneseq
        %v282 = vand.u32 %v281, 127
        %vm283 = vcmp.eq.s32.totalorder %v282, 11
        %v284 = vmul.f32 %v280, %v273
        %285 = vadd.xlane.f32.xlu0 %v284
        %v286 = vpop.xlane.xlu0 %285
        %v287 = vsel %vm283, %v286, %v273
        %v288 = vmul.f32 %v280, %v277
        %289 = vadd.xlane.f32.xlu0 %v288
        %v290 = vpop.xlane.xlu0 %289
        %v291 = vsel %vm283, %v290, %v277
        %s292 = scalar_lea.vmem [#allocation2], 10
        %v293 = vld [vmem:[%s292] ss:$0 sm:$0xff]
        %v294 = vxor.u32 %v293, 2147483648
        %v295 = vlaneseq
        %v296 = vand.u32 %v295, 127
        %vm297 = vcmp.eq.s32.totalorder %v296, 10
        %v298 = vmul.f32 %v294, %v287
        %299 = vadd.xlane.f32.xlu0 %v298
        %v300 = vpop.xlane.xlu0 %299
        %v301 = vsel %vm297, %v300, %v287
        %v302 = vmul.f32 %v294, %v291
        %303 = vadd.xlane.f32.xlu0 %v302
        %v304 = vpop.xlane.xlu0 %303
        %v305 = vsel %vm297, %v304, %v291
        %s306 = scalar_lea.vmem [#allocation2], 9
        %v307 = vld [vmem:[%s306] ss:$0 sm:$0xff]
        %v308 = vxor.u32 %v307, 2147483648
        %v309 = vlaneseq
        %v310 = vand.u32 %v309, 127
        %vm311 = vcmp.eq.s32.totalorder %v310, 9
        %v312 = vmul.f32 %v308, %v301
        %313 = vadd.xlane.f32.xlu0 %v312
        %v314 = vpop.xlane.xlu0 %313
        %v315 = vsel %vm311, %v314, %v301
        %v316 = vmul.f32 %v308, %v305
        %317 = vadd.xlane.f32.xlu0 %v316
        %v318 = vpop.xlane.xlu0 %317
        %v319 = vsel %vm311, %v318, %v305
        %s320 = scalar_lea.vmem [#allocation2], 8
        %v321 = vld [vmem:[%s320] ss:$0 sm:$0xff]
        %v322 = vxor.u32 %v321, 2147483648
        %v323 = vlaneseq
        %v324 = vand.u32 %v323, 127
        %vm325 = vcmp.eq.s32.totalorder %v324, 8
        %v326 = vmul.f32 %v322, %v315
        %327 = vadd.xlane.f32.xlu0 %v326
        %v328 = vpop.xlane.xlu0 %327
        %v329 = vsel %vm325, %v328, %v315
        %v330 = vmul.f32 %v322, %v319
        %331 = vadd.xlane.f32.xlu0 %v330
        %v332 = vpop.xlane.xlu0 %331
        %v333 = vsel %vm325, %v332, %v319
        %s334 = scalar_lea.vmem [#allocation2], 7
        %v335 = vld [vmem:[%s334] ss:$0 sm:$0xff]
        %v336 = vxor.u32 %v335, 2147483648
        %v337 = vlaneseq
        %v338 = vand.u32 %v337, 127
        %vm339 = vcmp.eq.s32.totalorder %v338, 7
        %v340 = vmul.f32 %v336, %v173
        %341 = vadd.xlane.f32.xlu0 %v340
        %v342 = vpop.xlane.xlu0 %341
        %v343 = vsel %vm339, %v342, %v173
        %v344 = vmul.f32 %v336, %v329
        %345 = vadd.xlane.f32.xlu0 %v344
        %v346 = vpop.xlane.xlu0 %345
        %v347 = vsel %vm339, %v346, %v329
        %v348 = vmul.f32 %v336, %v333
        %349 = vadd.xlane.f32.xlu0 %v348
        %v350 = vpop.xlane.xlu0 %349
        %v351 = vsel %vm339, %v350, %v333
        %s352 = scalar_lea.vmem [#allocation2], 6
        %v353 = vld [vmem:[%s352] ss:$0 sm:$0xff]
        %v354 = vxor.u32 %v353, 2147483648
        %v355 = vlaneseq
        %v356 = vand.u32 %v355, 127
        %vm357 = vcmp.eq.s32.totalorder %v356, 6
        %v358 = vmul.f32 %v354, %v343
        %359 = vadd.xlane.f32.xlu0 %v358
        %v360 = vpop.xlane.xlu0 %359
        %v361 = vsel %vm357, %v360, %v343
        %v362 = vmul.f32 %v354, %v347
        %363 = vadd.xlane.f32.xlu0 %v362
        %v364 = vpop.xlane.xlu0 %363
        %v365 = vsel %vm357, %v364, %v347
        %v366 = vmul.f32 %v354, %v351
        %367 = vadd.xlane.f32.xlu0 %v366
        %v368 = vpop.xlane.xlu0 %367
        %v369 = vsel %vm357, %v368, %v351
        %s370 = scalar_lea.vmem [#allocation2], 5
        %v371 = vld [vmem:[%s370] ss:$0 sm:$0xff]
        %v372 = vxor.u32 %v371, 2147483648
        %v373 = vlaneseq
        %v374 = vand.u32 %v373, 127
        %vm375 = vcmp.eq.s32.totalorder %v374, 5
        %v376 = vmul.f32 %v372, %v361
        %377 = vadd.xlane.f32.xlu0 %v376
        %v378 = vpop.xlane.xlu0 %377
        %v379 = vsel %vm375, %v378, %v361
        %v380 = vmul.f32 %v372, %v365
        %381 = vadd.xlane.f32.xlu0 %v380
        %v382 = vpop.xlane.xlu0 %381
        %v383 = vsel %vm375, %v382, %v365
        %v384 = vmul.f32 %v372, %v369
        %385 = vadd.xlane.f32.xlu0 %v384
        %v386 = vpop.xlane.xlu0 %385
        %v387 = vsel %vm375, %v386, %v369
        %s388 = scalar_lea.vmem [#allocation2], 4
        %v389 = vld [vmem:[%s388] ss:$0 sm:$0xff]
        %v390 = vxor.u32 %v389, 2147483648
        %v391 = vlaneseq
        %v392 = vand.u32 %v391, 127
        %vm393 = vcmp.eq.s32.totalorder %v392, 4
        %v394 = vmul.f32 %v390, %v379
        %395 = vadd.xlane.f32.xlu0 %v394
        %v396 = vpop.xlane.xlu0 %395
        %v397 = vsel %vm393, %v396, %v379
        %v398 = vmul.f32 %v390, %v383
        %399 = vadd.xlane.f32.xlu0 %v398
        %v400 = vpop.xlane.xlu0 %399
        %v401 = vsel %vm393, %v400, %v383
        %v402 = vmul.f32 %v390, %v387
        %403 = vadd.xlane.f32.xlu0 %v402
        %v404 = vpop.xlane.xlu0 %403
        %v405 = vsel %vm393, %v404, %v387
        %s406 = scalar_lea.vmem [#allocation2], 3
        %v407 = vld [vmem:[%s406] ss:$0 sm:$0xff]
        %v408 = vxor.u32 %v407, 2147483648
        %v409 = vlaneseq
        %v410 = vand.u32 %v409, 127
        %vm411 = vcmp.eq.s32.totalorder %v410, 3
        %v412 = vmul.f32 %v408, %v397
        %413 = vadd.xlane.f32.xlu0 %v412
        %v414 = vpop.xlane.xlu0 %413
        %v415 = vsel %vm411, %v414, %v397
        %v416 = vmul.f32 %v408, %v401
        %417 = vadd.xlane.f32.xlu0 %v416
        %v418 = vpop.xlane.xlu0 %417
        %v419 = vsel %vm411, %v418, %v401
        %v420 = vmul.f32 %v408, %v405
        %421 = vadd.xlane.f32.xlu0 %v420
        %v422 = vpop.xlane.xlu0 %421
        %v423 = vsel %vm411, %v422, %v405
        %s424 = scalar_lea.vmem [#allocation2], 2
        %v425 = vld [vmem:[%s424] ss:$0 sm:$0xff]
        %v426 = vxor.u32 %v425, 2147483648
        %v427 = vlaneseq
        %v428 = vand.u32 %v427, 127
        %vm429 = vcmp.eq.s32.totalorder %v428, 2
        %v430 = vmul.f32 %v426, %v415
        %431 = vadd.xlane.f32.xlu0 %v430
        %v432 = vpop.xlane.xlu0 %431
        %v433 = vsel %vm429, %v432, %v415
        %v434 = vmul.f32 %v426, %v419
        %435 = vadd.xlane.f32.xlu0 %v434
        %v436 = vpop.xlane.xlu0 %435
        %v437 = vsel %vm429, %v436, %v419
        %v438 = vmul.f32 %v426, %v423
        %439 = vadd.xlane.f32.xlu0 %v438
        %v440 = vpop.xlane.xlu0 %439
        %v441 = vsel %vm429, %v440, %v423
        %s442 = scalar_lea.vmem [#allocation2], 1
        %v443 = vld [vmem:[%s442] ss:$0 sm:$0xff]
        %v444 = vxor.u32 %v443, 2147483648
        %v445 = vlaneseq
        %v446 = vand.u32 %v445, 127
        %vm447 = vcmp.eq.s32.totalorder %v446, 1
        %v448 = vmul.f32 %v444, %v433
        %449 = vadd.xlane.f32.xlu0 %v448
        %v450 = vpop.xlane.xlu0 %449
        %v451 = vsel %vm447, %v450, %v433
        %v452 = vmul.f32 %v444, %v437
        %453 = vadd.xlane.f32.xlu0 %v452
        %v454 = vpop.xlane.xlu0 %453
        %v455 = vsel %vm447, %v454, %v437
        %v456 = vmul.f32 %v444, %v441
        %457 = vadd.xlane.f32.xlu0 %v456
        %v458 = vpop.xlane.xlu0 %457
        %v459 = vsel %vm447, %v458, %v441
        %v460 = vld [vmem:[#allocation2] ss:$0 sm:$0xff]
        %v461 = vxor.u32 %v460, 2147483648
        %v462 = vlaneseq
        %v463 = vand.u32 %v462, 127
        %vm464 = vcmp.eq.s32.totalorder %v463, 0
        %v465 = vmul.f32 %v461, %v451
        %466 = vadd.xlane.f32.xlu0 %v465
        %v467 = vpop.xlane.xlu0 %466
        %v468 = vsel %vm464, %v467, %v451
        %v469 = vmul.f32 %v461, %v455
        %470 = vadd.xlane.f32.xlu0 %v469
        %v471 = vpop.xlane.xlu0 %470
        %v472 = vsel %vm464, %v471, %v455
        %v473 = vmul.f32 %v461, %v459
        %474 = vadd.xlane.f32.xlu0 %v473
        %v475 = vpop.xlane.xlu0 %474
        %v476 = vsel %vm464, %v475, %v459
        %v477 = vrcp.pop %v128
        %v478 = vmul.f32 %v468, %v477
        %vm479 = vweird.f32 %v128
        %v480 = vsel %vm479, %v468, %v478
        %481 = vst [vmem:[%s117] sm:$0xff] %v480
        %v482 = vrcp.pop %v144
        %v483 = vmul.f32 %v472, %v482
        %vm484 = vweird.f32 %v144
        %v485 = vsel %vm484, %v472, %v483
        %s486 = scalar_lea.vmem %s117, 8 [#allocation1]
        %487 = vst [vmem:[%s486] sm:$0xff] %v485
        %v488 = vrcp.pop %v160
        %v489 = vmul.f32 %v476, %v488
        %vm490 = vweird.f32 %v160
        %v491 = vsel %vm490, %v476, %v489
        %s492 = scalar_lea.vmem %s117, 16 [#allocation1]
        %493 = vst [vmem:[%s492] sm:$0xff] %v491
        %s494 = sand.u32 %s8, 1
        %s495 = sand.u32 %s8, 1
        %s496 = smul.addr %s495, 24
        %s497 = scalar_lea.vmem [#allocation1], %s496
        %s498 = sadd.s32 %s17, %s16
        %s499 = smul.addr %s15, 3
        %s500 = sadd.s32 %s498, %s499
        %s501 = smul.addr %s14, 3
        %s502 = sadd.s32 %s500, %s501
        %s503 = smul.addr %s502, 8
        %s504 = scalar_lea.vmem %s1, %s503
        // Predicated region
        $region55: #{custom-call.12} parent=53 // pred_check
          _
        $region56: #{custom-call.12} parent=53 // pred_check_branch
          %506 = sbr.rel (0) target = $region58
        $region57: #{custom-call.12} parent=53 // pred_region
          // Predicated region
          $region59: #{custom-call.12} parent=57 // pred_check
            _
          $region60: #{custom-call.12} parent=57 // pred_check_branch
            %508 = sbr.rel (0) target = $region62
          $region61: #{custom-call.12} parent=57 // pred_region
            // Predicated region
            $region74: #{custom-call.12} parent=61 // pred_check
              _
            $region75: #{custom-call.12} parent=61 // pred_check_branch
              %527 = sbr.rel (0) target = $region77
            $region76: #{custom-call.12} parent=61 // pred_region
              loop: start=0, step=1, limit=1
              $region78: #{custom-call.12} parent=76 // loop_pre_header
                _
              $region79: #{custom-call.12} parent=76 // loop_header
                %s529 = sphi 0, %s533
                %p530 = scmp.ge.s32.totalorder %s529, 1
                %s534 = sphi %s497, %s497
                %s535 = sphi %s504, %s504
              $region80: #{custom-call.12} parent=76 // loop_header_branch
                %532 = sbr.rel (%p530) target = $region84
              $region81: #{custom-call.12} parent=76 // loop_body
                %v536 = vld [vmem:[%s534] sm:$0xff]
                %537 = vst [vmem:[%s535] sm:$0xff] %v536
                %v538 = vld [vmem:[%s534 + $0x8] sm:$0xff]
                %539 = vst [vmem:[%s535 + $0x8] sm:$0xff] %v538
                %v540 = vld [vmem:[%s534 + $0x10] sm:$0xff]
                %541 = vst [vmem:[%s535 + $0x10] sm:$0xff] %v540
              $region82: #{custom-call.12} parent=76 // loop_footer
                %s533 = sadd.s32 1, %s529
              $region83: #{custom-call.12} parent=76 // loop_footer_branch
                %528 = sbr.rel target = $region79
              $region84: #{custom-call.12} parent=76 // loop_exit
                _
            $region77: #{custom-call.12} parent=61 // pred_fallthru
              _
            // Predicated region
            $region85: #{custom-call.12} parent=61 // pred_check
              _
            $region86: #{custom-call.12} parent=61 // pred_check_branch
              %543 = sbr.rel target = $region88
            $region87: #{custom-call.12} parent=61 // pred_region
              _
            $region88: #{custom-call.12} parent=61 // pred_fallthru
              _
          $region62: #{custom-call.12} parent=57 // pred_fallthru
            _
          // Predicated region
          $region63: #{custom-call.12} parent=57 // pred_check
            _
          $region64: #{custom-call.12} parent=57 // pred_check_branch
            %510 = sbr.rel target = $region66
          $region65: #{custom-call.12} parent=57 // pred_region
            loop: start=0, step=1, limit=1
            $region67: #{custom-call.12} parent=65 // loop_pre_header
              _
            $region68: #{custom-call.12} parent=65 // loop_header
              %s513 = sphi 0, %s517
              %p514 = scmp.ge.s32.totalorder %s513, 1
              %s518 = sphi %s497, %s497
              %s519 = sphi %s504, %s504
            $region69: #{custom-call.12} parent=65 // loop_header_branch
              %516 = sbr.rel (%p514) target = $region73
            $region70: #{custom-call.12} parent=65 // loop_body
              %v520 = vld [vmem:[%s518] sm:$0xff]
              %521 = vst [vmem:[%s519] sm:$0xff] %v520
              %v522 = vld [vmem:[%s518 + $0x8] sm:$0xff]
              %523 = vst [vmem:[%s519 + $0x8] sm:$0xff] %v522
              %v524 = vld [vmem:[%s518 + $0x10] sm:$0xff]
              %525 = vst [vmem:[%s519 + $0x10] sm:$0xff] %v524
            $region71: #{custom-call.12} parent=65 // loop_footer
              %s517 = sadd.s32 1, %s513
            $region72: #{custom-call.12} parent=65 // loop_footer_branch
              %512 = sbr.rel target = $region68
            $region73: #{custom-call.12} parent=65 // loop_exit
              _
          $region66: #{custom-call.12} parent=57 // pred_fallthru
            _
        $region58: #{custom-call.12} parent=53 // pred_fallthru
          _
        %544 = vnop
      $region54: #{custom-call.12} parent=5 // pred_fallthru
        _
      %p545 = scmp.le.s32.totalorder 2, %s3
      // Predicated region
      $region89: #{custom-call.12} parent=5 // pred_check
        %p546 = pneg %p545
      $region90: #{custom-call.12} parent=5 // pred_check_branch
        %548 = sbr.rel (%p546) target = $region92
      $region91: #{custom-call.12} parent=5 // pred_region
        %s549 = ssub.s32 %s3, 2
        %s550 = sand.u32 %s9, 1
        %s551 = sand.u32 %s9, 1
        %s552 = smul.addr %s551, 24
        %s553 = scalar_lea.vmem [#allocation1], %s552
      $region92: #{custom-call.12} parent=5 // pred_fallthru
        _
    $region6: #{custom-call.12} parent=1 // loop_footer
      %s7 = sadd.s32 1, %s3
    $region7: #{custom-call.12} parent=1 // loop_footer_branch
      %2 = sbr.rel target = $region3
    $region8: #{custom-call.12} parent=1 // loop_exit
      _

// kernel: sub.4
$region0: #{sub.4}
  #allocation0 [shape = 's32[1]{0}', space=sflag, size = 0x4, scoped, tag = 'scoped memory for sub.4']
  %s0 = inlined_call_operand.vmem [shape: f32[2], index: 0, kind: input, shape index: {}]
  %s1 = inlined_call_operand.vmem [shape: f32[2], index: 1, kind: input, shape index: {}]
  %s2 = inlined_call_operand.vmem [shape: f32[2], index: 2, kind: output, shape index: {}]
  %v3 = vld [vmem:[%s0] sm:$0x1]
  %v4 = vld [vmem:[%s1] sm:$0x1]
  %5 = xla_tuple %v3, %v4
  %6 = xla_tuple %5
  %v7 = vsub.f32 %v3, %v4
  %8 = xla_tuple %v7
  %9 = vst [vmem:[%s2] sm:$0x1] %v7

// kernel: classifier_forward.1
$region0: #{classifier_forward.1}
  #allocation0 [shape = 'u32[]', space=smem, size = 0x4, offset = 0x4, fixed_abs, tag = 'smem constant byte address 0x4 - core index']
  #allocation1 [shape = 'u32[144,128]{1,0:T(1,128)}', space=vmem, size = 0x12000, scoped, tag = 'internal scratch']
  %s0 = inlined_call_operand.vmem [shape: f32[128,512], index: 0, kind: input, shape index: {}]
  %s1 = inlined_call_operand.vmem [shape: bf16[4,512,32], index: 1, kind: input, shape index: {}]
  %s2 = inlined_call_operand.vmem [shape: bf16[4,32,512], index: 2, kind: input, shape index: {}]
  %s3 = inlined_call_operand.vmem [shape: f32[4,1,128], index: 3, kind: output, shape index: {}]
  %s4 = sld [smem:[#allocation0]]
  $region45: #{classifier_forward.1} parent=0
    _
  %s6 = ssub.s32 1, %s4
  %s7 = scalar_select 0, %s6, %s4
  loop: start=0, step=1, limit=6
  $region2: #{classifier_forward.1} parent=0 // loop_pre_header
    _
  $region3: #{classifier_forward.1} parent=0 // loop_header
    %s9 = sphi 0, %s13
    %p10 = scmp.ge.s32.totalorder %s9, 6
    %s16 = sphi 0, %s28
    %s17 = sphi 0, %s24
    %s18 = sphi 0, %s16
    %s19 = sphi 0, %s17
    %s20 = sphi 0, %s18
    %s21 = sphi 0, %s19
    %s31 = sphi 0, %s33
    %s34 = sphi 0, %s31
    %s35 = sphi 0, %s34
    %s51 = sphi 0, %s35
    %s57 = sphi 0, %s59
    %s60 = sphi 0, %s57
    %s61 = sphi 0, %s60
    %s77 = sphi 0, %s61
    %s83 = sphi 0, %s85
    %s86 = sphi 0, %s83
    %s87 = sphi 0, %s86
    %s103 = sphi 0, %s87
    %s111 = sphi 0, %s113
    %s114 = sphi 0, %s111
    %s115 = sphi 0, %s114
    %s131 = sphi 0, %s115
  $region4: #{classifier_forward.1} parent=0 // loop_header_branch
    %12 = sbr.rel (%p10) target = $region8
  $region5: #{classifier_forward.1} parent=0 // loop_body
    %s14 = ssub.s32 %s9, 1
    %s15 = ssub.s32 %s9, 2
    %s22 = sadd.s32 1, %s17
    %p23 = scmp.ge.s32.totalorder %s22, 4
    %s24 = scalar_select %p23, 0, %s22
    %s25 = sadd.s32 1, %s16
    %s26 = scalar_select %p23, %s25, %s16
    %p27 = scmp.ge.s32.totalorder %s26, 1
    %s28 = scalar_select %p27, 0, %s26
    %s29 = ssub.s32 %s16, %s28
    %p30 = scmp.eq.s32.totalorder %s29, 0
    %s32 = sadd.s32 %s31, 1
    %s33 = scalar_select %p30, %s31, %s32
    %p36 = pneg %p30
    %p37 = scmp.eq.s32.totalorder %s9, 3
    %p38 = por %p36, %p37
    %p39 = scmp.ne.s32.totalorder %s31, %s34
    %p40 = scmp.eq.s32.totalorder %s9, 0
    %p41 = por %p39, %p40
    %p42 = scmp.ne.s32.totalorder %s31, %s34
    %p43 = scmp.eq.s32.totalorder %s14, 3
    %p44 = por %p42, %p43
    %p45 = scmp.ne.s32.totalorder %s34, %s35
    %p46 = scmp.eq.s32.totalorder %s14, 0
    %p47 = por %p45, %p46
    %p48 = scmp.ne.s32.totalorder %s34, %s35
    %p49 = scmp.eq.s32.totalorder %s15, 3
    %p50 = por %p48, %p49
    %p52 = scmp.ne.s32.totalorder %s35, %s51
    %p53 = scmp.eq.s32.totalorder %s15, 0
    %p54 = por %p52, %p53
    %s55 = ssub.s32 %s17, %s24
    %p56 = scmp.eq.s32.totalorder %s55, 0
    %s58 = sadd.s32 %s57, 1
    %s59 = scalar_select %p56, %s57, %s58
    %p62 = pneg %p56
    %p63 = scmp.eq.s32.totalorder %s9, 3
    %p64 = por %p62, %p63
    %p65 = scmp.ne.s32.totalorder %s57, %s60
    %p66 = scmp.eq.s32.totalorder %s9, 0
    %p67 = por %p65, %p66
    %p68 = scmp.ne.s32.totalorder %s57, %s60
    %p69 = scmp.eq.s32.totalorder %s14, 3
    %p70 = por %p68, %p69
    %p71 = scmp.ne.s32.totalorder %s60, %s61
    %p72 = scmp.eq.s32.totalorder %s14, 0
    %p73 = por %p71, %p72
    %p74 = scmp.ne.s32.totalorder %s60, %s61
    %p75 = scmp.eq.s32.totalorder %s15, 3
    %p76 = por %p74, %p75
    %p78 = scmp.ne.s32.totalorder %s61, %s77
    %p79 = scmp.eq.s32.totalorder %s15, 0
    %p80 = por %p78, %p79
    %s81 = ssub.s32 %s17, %s24
    %p82 = scmp.eq.s32.totalorder %s81, 0
    %s84 = sadd.s32 %s83, 1
    %s85 = scalar_select %p82, %s83, %s84
    %p88 = pneg %p82
    %p89 = scmp.eq.s32.totalorder %s9, 3
    %p90 = por %p88, %p89
    %p91 = scmp.ne.s32.totalorder %s83, %s86
    %p92 = scmp.eq.s32.totalorder %s9, 0
    %p93 = por %p91, %p92
    %p94 = scmp.ne.s32.totalorder %s83, %s86
    %p95 = scmp.eq.s32.totalorder %s14, 3
    %p96 = por %p94, %p95
    %p97 = scmp.ne.s32.totalorder %s86, %s87
    %p98 = scmp.eq.s32.totalorder %s14, 0
    %p99 = por %p97, %p98
    %p100 = scmp.ne.s32.totalorder %s86, %s87
    %p101 = scmp.eq.s32.totalorder %s15, 3
    %p102 = por %p100, %p101
    %p104 = scmp.ne.s32.totalorder %s87, %s103
    %p105 = scmp.eq.s32.totalorder %s15, 0
    %p106 = por %p104, %p105
    %s107 = ssub.s32 %s17, %s24
    %s108 = ssub.s32 %s16, %s28
    %s109 = sor.u32 %s107, %s108
    %p110 = scmp.eq.s32.totalorder %s109, 0
    %s112 = sadd.s32 %s111, 1
    %s113 = scalar_select %p110, %s111, %s112
    %p116 = pneg %p110
    %p117 = scmp.eq.s32.totalorder %s9, 3
    %p118 = por %p116, %p117
    %p119 = scmp.ne.s32.totalorder %s111, %s114
    %p120 = scmp.eq.s32.totalorder %s9, 0
    %p121 = por %p119, %p120
    %p122 = scmp.ne.s32.totalorder %s111, %s114
    %p123 = scmp.eq.s32.totalorder %s14, 3
    %p124 = por %p122, %p123
    %p125 = scmp.ne.s32.totalorder %s114, %s115
    %p126 = scmp.eq.s32.totalorder %s14, 0
    %p127 = por %p125, %p126
    %p128 = scmp.ne.s32.totalorder %s114, %s115
    %p129 = scmp.eq.s32.totalorder %s15, 3
    %p130 = por %p128, %p129
    %p132 = scmp.ne.s32.totalorder %s115, %s131
    %p133 = scmp.eq.s32.totalorder %s15, 0
    %p134 = por %p132, %p133
    %p135 = scmp.le.s32.totalorder 1, %s9
    %p136 = scmp.lt.s32.totalorder %s9, 5
    %p137 = pnand %p135, %p136
    %p138 = pneg %p137
    // Predicated region
    $region9: #{classifier_forward.1} parent=5 // pred_check
      _
    $region10: #{classifier_forward.1} parent=5 // pred_check_branch
      %140 = sbr.rel (%p137) target = $region12
    $region11: #{classifier_forward.1} parent=5 // pred_region
      %s141 = ssub.s32 %s9, 1
      // Predicated region
      $region13: #{classifier_forward.1} parent=11 // pred_check
        %p142 = pneg %p47
      $region14: #{classifier_forward.1} parent=11 // pred_check_branch
        %144 = sbr.rel (%p142) target = $region16
      $region15: #{classifier_forward.1} parent=11 // pred_region
        %s145 = smul.u32 16, %s18
        %p146 = scmp.lt.s32.totalorder %s145, 15
        %s147 = scalar_select %p146, %s145, 15
        %s148 = smul.addr %s147, 4
        %s149 = smul.addr %s148, 8
        %s150 = scalar_lea.vmem %s0, %s149
        %s151 = smul.u32 16, %s18
      $region16: #{classifier_forward.1} parent=11 // pred_fallthru
        _
    $region12: #{classifier_forward.1} parent=5 // pred_fallthru
      _
    %p152 = scmp.lt.s32.totalorder %s9, 4
    // Predicated region
    $region17: #{classifier_forward.1} parent=5 // pred_check
      %p153 = pneg %p152
    $region18: #{classifier_forward.1} parent=5 // pred_check_branch
      %155 = sbr.rel (%p153) target = $region20
    $region19: #{classifier_forward.1} parent=5 // pred_region
      // Predicated region
      $region21: #{classifier_forward.1} parent=19 // pred_check
        %p156 = pneg %p67
      $region22: #{classifier_forward.1} parent=19 // pred_check_branch
        %158 = sbr.rel (%p156) target = $region24
      $region23: #{classifier_forward.1} parent=19 // pred_region
        %p159 = scmp.lt.s32.totalorder %s17, 3
        %s160 = scalar_select %p159, %s17, 3
        %s161 = smul.addr %s160, 64
        %s162 = smul.addr %s161, 4
        %s163 = scalar_lea.vmem %s1, %s162
      $region24: #{classifier_forward.1} parent=19 // pred_fallthru
        _
      // Predicated region
      $region25: #{classifier_forward.1} parent=19 // pred_check
        %p164 = pneg %p93
      $region26: #{classifier_forward.1} parent=19 // pred_check_branch
        %166 = sbr.rel (%p164) target = $region28
      $region27: #{classifier_forward.1} parent=19 // pred_region
        %p167 = scmp.lt.s32.totalorder %s17, 3
        %s168 = scalar_select %p167, %s17, 3
        %s169 = smul.addr %s168, 16
        %s170 = smul.addr %s169, 4
        %s171 = scalar_lea.vmem %s2, %s170
      $region28: #{classifier_forward.1} parent=19 // pred_fallthru
        _
    $region20: #{classifier_forward.1} parent=5 // pred_fallthru
      _
    %p172 = scmp.le.s32.totalorder 1, %s9
    %p173 = scmp.lt.s32.totalorder %s9, 5
    %p174 = pnand %p172, %p173
    %p175 = pneg %p174
    // Predicated region
    $region29: #{classifier_forward.1} parent=5 // pred_check
      _
    $region30: #{classifier_forward.1} parent=5 // pred_check_branch
      %177 = sbr.rel (%p174) target = $region32
    $region31: #{classifier_forward.1} parent=5 // pred_region
      %s178 = ssub.s32 %s9, 1
      %s179 = smul.u32 16, %s18
      %p180 = scmp.lt.s32.totalorder %s179, 15
      %s181 = scalar_select %p180, %s179, 15
      %s182 = smul.addr %s181, 4
      %s183 = smul.addr %s182, 8
      %s184 = scalar_lea.vmem %s0, %s183
      %p185 = pneg %p47
      %p186 = pneg %p44
      %p187 = scmp.lt.s32.totalorder %s19, 3
      %s188 = scalar_select %p187, %s19, 3
      %s189 = smul.addr %s188, 64
      %s190 = smul.addr %s189, 4
      %s191 = scalar_lea.vmem %s1, %s190
      %p192 = pneg %p73
      %p193 = pneg %p70
      %p194 = scmp.lt.s32.totalorder %s19, 3
      %s195 = scalar_select %p194, %s19, 3
      %s196 = smul.addr %s195, 16
      %s197 = smul.addr %s196, 4
      %s198 = scalar_lea.vmem %s2, %s197
      %p199 = pneg %p99
      %p200 = pneg %p96
      %p201 = pneg %p127
      %p202 = pneg %p124
      %p203 = scmp.lt.s32.totalorder %s19, 3
      %s204 = scalar_select %p203, %s19, 3
      %p205 = scmp.lt.s32.totalorder %s18, 0
      %s206 = scalar_select %p205, %s18, 0
      %s207 = sadd.s32 %s206, %s204
      %s208 = scalar_lea.vmem %s3, %s207
      %s209 = smul.u32 16, %s18
      %p210 = scmp.lt.s32.totalorder %s209, 15
      %s211 = scalar_select %p210, %s209, 15
      %s212 = smul.addr %s211, 4
      %s213 = smul.addr %s212, 8
      %s214 = scalar_lea.vmem %s0, %s213
      %s215 = smul.u32 16, %s18
      %p216 = scmp.lt.s32.totalorder %s19, 3
      %s217 = scalar_select %p216, %s19, 3
      %s218 = smul.addr %s217, 64
      %s219 = smul.addr %s218, 4
      %s220 = scalar_lea.vmem %s1, %s219
      %p221 = scmp.lt.s32.totalorder %s19, 3
      %s222 = scalar_select %p221, %s19, 3
      %s223 = smul.addr %s222, 16
      %s224 = smul.addr %s223, 4
      %s225 = scalar_lea.vmem %s2, %s224
      %p226 = scmp.lt.s32.totalorder %s19, 3
      %s227 = scalar_select %p226, %s19, 3
      %p228 = scmp.lt.s32.totalorder %s18, 0
      %s229 = scalar_select %p228, %s18, 0
      %s230 = sadd.s32 %s229, %s227
      %s231 = scalar_lea.vmem %s3, %s230
      %v233 = vld [vmem:[%s214] sm:$0xff]
      %v234 = vld [vmem:[%s214 + $0x8] sm:$0xff]
      %v235 = vld [vmem:[%s214 + $0x10] sm:$0xff]
      %v236 = vld [vmem:[%s214 + $0x18] sm:$0xff]
      %v237 = vld [vmem:[%s214 + $0x20] sm:$0xff]
      %v238 = vld [vmem:[%s214 + $0x28] sm:$0xff]
      %v239 = vld [vmem:[%s214 + $0x30] sm:$0xff]
      %v240 = vld [vmem:[%s214 + $0x38] sm:$0xff]
      %v241 = vld [vmem:[%s214 + $0x40] sm:$0xff]
      %v242 = vld [vmem:[%s214 + $0x48] sm:$0xff]
      %v243 = vld [vmem:[%s214 + $0x50] sm:$0xff]
      %v244 = vld [vmem:[%s214 + $0x58] sm:$0xff]
      %v245 = vld [vmem:[%s214 + $0x60] sm:$0xff]
      %v246 = vld [vmem:[%s214 + $0x68] sm:$0xff]
      %v247 = vld [vmem:[%s214 + $0x70] sm:$0xff]
      %v248 = vld [vmem:[%s214 + $0x78] sm:$0xff]
      %v249 = vld [vmem:[%s214 + $0x80] sm:$0xff]
      %v250 = vld [vmem:[%s214 + $0x88] sm:$0xff]
      %v251 = vld [vmem:[%s214 + $0x90] sm:$0xff]
      %v252 = vld [vmem:[%s214 + $0x98] sm:$0xff]
      %v253 = vld [vmem:[%s214 + $0xa0] sm:$0xff]
      %v254 = vld [vmem:[%s214 + $0xa8] sm:$0xff]
      %v255 = vld [vmem:[%s214 + $0xb0] sm:$0xff]
      %v256 = vld [vmem:[%s214 + $0xb8] sm:$0xff]
      %v257 = vld [vmem:[%s214 + $0xc0] sm:$0xff]
      %v258 = vld [vmem:[%s214 + $0xc8] sm:$0xff]
      %v259 = vld [vmem:[%s214 + $0xd0] sm:$0xff]
      %v260 = vld [vmem:[%s214 + $0xd8] sm:$0xff]
      %v261 = vld [vmem:[%s214 + $0xe0] sm:$0xff]
      %v262 = vld [vmem:[%s214 + $0xe8] sm:$0xff]
      %v263 = vld [vmem:[%s214 + $0xf0] sm:$0xff]
      %v264 = vld [vmem:[%s214 + $0xf8] sm:$0xff]
      %v265 = vld [vmem:[%s214 + $0x100] sm:$0xff]
      %v266 = vld [vmem:[%s214 + $0x108] sm:$0xff]
      %v267 = vld [vmem:[%s214 + $0x110] sm:$0xff]
      %v268 = vld [vmem:[%s214 + $0x118] sm:$0xff]
      %v269 = vld [vmem:[%s214 + $0x120] sm:$0xff]
      %v270 = vld [vmem:[%s214 + $0x128] sm:$0xff]
      %v271 = vld [vmem:[%s214 + $0x130] sm:$0xff]
      %v272 = vld [vmem:[%s214 + $0x138] sm:$0xff]
      %v273 = vld [vmem:[%s214 + $0x140] sm:$0xff]
      %v274 = vld [vmem:[%s214 + $0x148] sm:$0xff]
      %v275 = vld [vmem:[%s214 + $0x150] sm:$0xff]
      %v276 = vld [vmem:[%s214 + $0x158] sm:$0xff]
      %v277 = vld [vmem:[%s214 + $0x160] sm:$0xff]
      %v278 = vld [vmem:[%s214 + $0x168] sm:$0xff]
      %v279 = vld [vmem:[%s214 + $0x170] sm:$0xff]
      %v280 = vld [vmem:[%s214 + $0x178] sm:$0xff]
      %v281 = vld [vmem:[%s214 + $0x180] sm:$0xff]
      %v282 = vld [vmem:[%s214 + $0x188] sm:$0xff]
      %v283 = vld [vmem:[%s214 + $0x190] sm:$0xff]
      %v284 = vld [vmem:[%s214 + $0x198] sm:$0xff]
      %v285 = vld [vmem:[%s214 + $0x1a0] sm:$0xff]
      %v286 = vld [vmem:[%s214 + $0x1a8] sm:$0xff]
      %v287 = vld [vmem:[%s214 + $0x1b0] sm:$0xff]
      %v288 = vld [vmem:[%s214 + $0x1b8] sm:$0xff]
      %v289 = vld [vmem:[%s214 + $0x1c0] sm:$0xff]
      %v290 = vld [vmem:[%s214 + $0x1c8] sm:$0xff]
      %v291 = vld [vmem:[%s214 + $0x1d0] sm:$0xff]
      %v292 = vld [vmem:[%s214 + $0x1d8] sm:$0xff]
      %v293 = vld [vmem:[%s214 + $0x1e0] sm:$0xff]
      %v294 = vld [vmem:[%s214 + $0x1e8] sm:$0xff]
      %v295 = vld [vmem:[%s214 + $0x1f0] sm:$0xff]
      %v296 = vld [vmem:[%s214 + $0x1f8] sm:$0xff]
      %v297 = vpack.c.bf16 %v237, %v233
      %v298 = vpack.c.bf16 %v238, %v234
      %v299 = vpack.c.bf16 %v239, %v235
      %v300 = vpack.c.bf16 %v240, %v236
      %v301 = vpack.c.bf16 %v245, %v241
      %v302 = vpack.c.bf16 %v246, %v242
      %v303 = vpack.c.bf16 %v247, %v243
      %v304 = vpack.c.bf16 %v248, %v244
      %v305 = vpack.c.bf16 %v253, %v249
      %v306 = vpack.c.bf16 %v254, %v250
      %v307 = vpack.c.bf16 %v255, %v251
      %v308 = vpack.c.bf16 %v256, %v252
      %v309 = vpack.c.bf16 %v261, %v257
      %v310 = vpack.c.bf16 %v262, %v258
      %v311 = vpack.c.bf16 %v263, %v259
      %v312 = vpack.c.bf16 %v264, %v260
      %v313 = vpack.c.bf16 %v269, %v265
      %v314 = vpack.c.bf16 %v270, %v266
      %v315 = vpack.c.bf16 %v271, %v267
      %v316 = vpack.c.bf16 %v272, %v268
      %v317 = vpack.c.bf16 %v277, %v273
      %v318 = vpack.c.bf16 %v278, %v274
      %v319 = vpack.c.bf16 %v279, %v275
      %v320 = vpack.c.bf16 %v280, %v276
      %v321 = vpack.c.bf16 %v285, %v281
      %v322 = vpack.c.bf16 %v286, %v282
      %v323 = vpack.c.bf16 %v287, %v283
      %v324 = vpack.c.bf16 %v288, %v284
      %v325 = vpack.c.bf16 %v293, %v289
      %v326 = vpack.c.bf16 %v294, %v290
      %v327 = vpack.c.bf16 %v295, %v291
      %v328 = vpack.c.bf16 %v296, %v292
      %v329 = vld [vmem:[%s220] sm:$0xf]
      %v330 = vld [vmem:[%s220 + $0x4] sm:$0xf]
      %v331 = vld [vmem:[%s220 + $0x8] sm:$0xf]
      %v332 = vld [vmem:[%s220 + $0xc] sm:$0xf]
      %v333 = vld [vmem:[%s220 + $0x10] sm:$0xf]
      %v334 = vld [vmem:[%s220 + $0x14] sm:$0xf]
      %v335 = vld [vmem:[%s220 + $0x18] sm:$0xf]
      %v336 = vld [vmem:[%s220 + $0x1c] sm:$0xf]
      %v337 = vld [vmem:[%s220 + $0x20] sm:$0xf]
      %v338 = vld [vmem:[%s220 + $0x24] sm:$0xf]
      %v339 = vld [vmem:[%s220 + $0x28] sm:$0xf]
      %v340 = vld [vmem:[%s220 + $0x2c] sm:$0xf]
      %v341 = vld [vmem:[%s220 + $0x30] sm:$0xf]
      %v342 = vld [vmem:[%s220 + $0x34] sm:$0xf]
      %v343 = vld [vmem:[%s220 + $0x38] sm:$0xf]
      %v344 = vld [vmem:[%s220 + $0x3c] sm:$0xf]
      %v345 = vld [vmem:[%s220 + $0x40] sm:$0xf]
      %v346 = vld [vmem:[%s220 + $0x44] sm:$0xf]
      %v347 = vld [vmem:[%s220 + $0x48] sm:$0xf]
      %v348 = vld [vmem:[%s220 + $0x4c] sm:$0xf]
      %v349 = vld [vmem:[%s220 + $0x50] sm:$0xf]
      %v350 = vld [vmem:[%s220 + $0x54] sm:$0xf]
      %v351 = vld [vmem:[%s220 + $0x58] sm:$0xf]
      %v352 = vld [vmem:[%s220 + $0x5c] sm:$0xf]
      %v353 = vld [vmem:[%s220 + $0x60] sm:$0xf]
      %v354 = vld [vmem:[%s220 + $0x64] sm:$0xf]
      %v355 = vld [vmem:[%s220 + $0x68] sm:$0xf]
      %v356 = vld [vmem:[%s220 + $0x6c] sm:$0xf]
      %v357 = vld [vmem:[%s220 + $0x70] sm:$0xf]
      %v358 = vld [vmem:[%s220 + $0x74] sm:$0xf]
      %v359 = vld [vmem:[%s220 + $0x78] sm:$0xf]
      %v360 = vld [vmem:[%s220 + $0x7c] sm:$0xf]
      %v361 = vld [vmem:[%s220 + $0x80] sm:$0xf]
      %v362 = vld [vmem:[%s220 + $0x84] sm:$0xf]
      %v363 = vld [vmem:[%s220 + $0x88] sm:$0xf]
      %v364 = vld [vmem:[%s220 + $0x8c] sm:$0xf]
      %v365 = vld [vmem:[%s220 + $0x90] sm:$0xf]
      %v366 = vld [vmem:[%s220 + $0x94] sm:$0xf]
      %v367 = vld [vmem:[%s220 + $0x98] sm:$0xf]
      %v368 = vld [vmem:[%s220 + $0x9c] sm:$0xf]
      %v369 = vld [vmem:[%s220 + $0xa0] sm:$0xf]
      %v370 = vld [vmem:[%s220 + $0xa4] sm:$0xf]
      %v371 = vld [vmem:[%s220 + $0xa8] sm:$0xf]
      %v372 = vld [vmem:[%s220 + $0xac] sm:$0xf]
      %v373 = vld [vmem:[%s220 + $0xb0] sm:$0xf]
      %v374 = vld [vmem:[%s220 + $0xb4] sm:$0xf]
      %v375 = vld [vmem:[%s220 + $0xb8] sm:$0xf]
      %v376 = vld [vmem:[%s220 + $0xbc] sm:$0xf]
      %v377 = vld [vmem:[%s220 + $0xc0] sm:$0xf]
      %v378 = vld [vmem:[%s220 + $0xc4] sm:$0xf]
      %v379 = vld [vmem:[%s220 + $0xc8] sm:$0xf]
      %v380 = vld [vmem:[%s220 + $0xcc] sm:$0xf]
      %v381 = vld [vmem:[%s220 + $0xd0] sm:$0xf]
      %v382 = vld [vmem:[%s220 + $0xd4] sm:$0xf]
      %v383 = vld [vmem:[%s220 + $0xd8] sm:$0xf]
      %v384 = vld [vmem:[%s220 + $0xdc] sm:$0xf]
      %v385 = vld [vmem:[%s220 + $0xe0] sm:$0xf]
      %v386 = vld [vmem:[%s220 + $0xe4] sm:$0xf]
      %v387 = vld [vmem:[%s220 + $0xe8] sm:$0xf]
      %v388 = vld [vmem:[%s220 + $0xec] sm:$0xf]
      %v389 = vld [vmem:[%s220 + $0xf0] sm:$0xf]
      %v390 = vld [vmem:[%s220 + $0xf4] sm:$0xf]
      %v391 = vld [vmem:[%s220 + $0xf8] sm:$0xf]
      %v392 = vld [vmem:[%s220 + $0xfc] sm:$0xf]
      %v393 = vld [vmem:[%s225] sm:$0xff]
      %v394 = vld [vmem:[%s225 + $0x8] sm:$0xff]
      %v395 = vld [vmem:[%s225 + $0x10] sm:$0xff]
      %v396 = vld [vmem:[%s225 + $0x18] sm:$0xff]
      %v397 = vld [vmem:[%s225 + $0x20] sm:$0xff]
      %v398 = vld [vmem:[%s225 + $0x28] sm:$0xff]
      %v399 = vld [vmem:[%s225 + $0x30] sm:$0xff]
      %v400 = vld [vmem:[%s225 + $0x38] sm:$0xff]
      %v465 = vunpack.c.l.b16 %v329
      %v466 = vunpack.c.l.b16 %v330
      %v467 = vunpack.c.l.b16 %v331
      %v468 = vunpack.c.l.b16 %v332
      %v469 = vunpack.c.l.b16 %v333
      %v470 = vunpack.c.l.b16 %v334
      %v471 = vunpack.c.l.b16 %v335
      %v472 = vunpack.c.l.b16 %v336
      %v473 = vunpack.c.l.b16 %v337
      %v474 = vunpack.c.l.b16 %v338
      %v475 = vunpack.c.l.b16 %v339
      %v476 = vunpack.c.l.b16 %v340
      %v477 = vunpack.c.l.b16 %v341
      %v478 = vunpack.c.l.b16 %v342
      %v479 = vunpack.c.l.b16 %v343
      %v480 = vunpack.c.l.b16 %v344
      %v481 = vunpack.c.l.b16 %v345
      %v482 = vunpack.c.l.b16 %v346
      %v483 = vunpack.c.l.b16 %v347
      %v484 = vunpack.c.l.b16 %v348
      %v485 = vunpack.c.l.b16 %v349
      %v486 = vunpack.c.l.b16 %v350
      %v487 = vunpack.c.l.b16 %v351
      %v488 = vunpack.c.l.b16 %v352
      %v489 = vunpack.c.l.b16 %v353
      %v490 = vunpack.c.l.b16 %v354
      %v491 = vunpack.c.l.b16 %v355
      %v492 = vunpack.c.l.b16 %v356
      %v493 = vunpack.c.l.b16 %v357
      %v494 = vunpack.c.l.b16 %v358
      %v495 = vunpack.c.l.b16 %v359
      %v496 = vunpack.c.l.b16 %v360
      %v497 = vunpack.c.l.b16 %v361
      %v498 = vunpack.c.l.b16 %v362
      %v499 = vunpack.c.l.b16 %v363
      %v500 = vunpack.c.l.b16 %v364
      %v501 = vunpack.c.l.b16 %v365
      %v502 = vunpack.c.l.b16 %v366
      %v503 = vunpack.c.l.b16 %v367
      %v504 = vunpack.c.l.b16 %v368
      %v505 = vunpack.c.l.b16 %v369
      %v506 = vunpack.c.l.b16 %v370
      %v507 = vunpack.c.l.b16 %v371
      %v508 = vunpack.c.l.b16 %v372
      %v509 = vunpack.c.l.b16 %v373
      %v510 = vunpack.c.l.b16 %v374
      %v511 = vunpack.c.l.b16 %v375
      %v512 = vunpack.c.l.b16 %v376
      %v513 = vunpack.c.l.b16 %v377
      %v514 = vunpack.c.l.b16 %v378
      %v515 = vunpack.c.l.b16 %v379
      %v516 = vunpack.c.l.b16 %v380
      %v517 = vunpack.c.l.b16 %v381
      %v518 = vunpack.c.l.b16 %v382
      %v519 = vunpack.c.l.b16 %v383
      %v520 = vunpack.c.l.b16 %v384
      %v521 = vunpack.c.l.b16 %v385
      %v522 = vunpack.c.l.b16 %v386
      %v523 = vunpack.c.l.b16 %v387
      %v524 = vunpack.c.l.b16 %v388
      %v525 = vunpack.c.l.b16 %v389
      %v526 = vunpack.c.l.b16 %v390
      %v527 = vunpack.c.l.b16 %v391
      %v528 = vunpack.c.l.b16 %v392
      %v529 = vpack.c.b16 %v466, %v465
      %v530 = vpack.c.b16 %v468, %v467
      %v531 = vpack.c.b16 %v470, %v469
      %v532 = vpack.c.b16 %v472, %v471
      %v533 = vpack.c.b16 %v474, %v473
      %v534 = vpack.c.b16 %v476, %v475
      %v535 = vpack.c.b16 %v478, %v477
      %v536 = vpack.c.b16 %v480, %v479
      %v537 = vpack.c.b16 %v482, %v481
      %v538 = vpack.c.b16 %v484, %v483
      %v539 = vpack.c.b16 %v486, %v485
      %v540 = vpack.c.b16 %v488, %v487
      %v541 = vpack.c.b16 %v490, %v489
      %v542 = vpack.c.b16 %v492, %v491
      %v543 = vpack.c.b16 %v494, %v493
      %v544 = vpack.c.b16 %v496, %v495
      %v545 = vpack.c.b16 %v498, %v497
      %v546 = vpack.c.b16 %v500, %v499
      %v547 = vpack.c.b16 %v502, %v501
      %v548 = vpack.c.b16 %v504, %v503
      %v549 = vpack.c.b16 %v506, %v505
      %v550 = vpack.c.b16 %v508, %v507
      %v551 = vpack.c.b16 %v510, %v509
      %v552 = vpack.c.b16 %v512, %v511
      %v553 = vpack.c.b16 %v514, %v513
      %v554 = vpack.c.b16 %v516, %v515
      %v555 = vpack.c.b16 %v518, %v517
      %v556 = vpack.c.b16 %v520, %v519
      %v557 = vpack.c.b16 %v522, %v521
      %v558 = vpack.c.b16 %v524, %v523
      %v559 = vpack.c.b16 %v526, %v525
      %v560 = vpack.c.b16 %v528, %v527
      %593 = vmatprep.subr.bf16.mxu0 0
      %594 = vmatpush1.bf16.msra.mxu0 %v529
      %595 = vmatprep.subr.bf16.mxu0 0
      %596 = vmatpush1.bf16.msra.mxu0 %v530
      %597 = vmatprep.subr.bf16.mxu0 0
      %598 = vmatpush1.bf16.msra.mxu0 %v531
      %599 = vmatprep.subr.bf16.mxu0 0
      %600 = vmatpush1.bf16.msra.mxu0 %v532
      %601 = vmatprep.subr.bf16.mxu0 0
      %602 = vmatpush1.bf16.msra.mxu0 %v533
      %603 = vmatprep.subr.bf16.mxu0 0
      %604 = vmatpush1.bf16.msra.mxu0 %v534
      %605 = vmatprep.subr.bf16.mxu0 0
      %606 = vmatpush1.bf16.msra.mxu0 %v535
      %607 = vmatprep.subr.bf16.mxu0 0
      %608 = vmatpush1.bf16.msra.mxu0 %v536
      %609 = vmatprep.subr.bf16.mxu0 0
      %610 = vmatpush1.bf16.msra.mxu0 %v537
      %611 = vmatprep.subr.bf16.mxu0 0
      %612 = vmatpush1.bf16.msra.mxu0 %v538
      %613 = vmatprep.subr.bf16.mxu0 0
      %614 = vmatpush1.bf16.msra.mxu0 %v539
      %615 = vmatprep.subr.bf16.mxu0 0
      %616 = vmatpush1.bf16.msra.mxu0 %v540
      %617 = vmatprep.subr.bf16.mxu0 0
      %618 = vmatpush1.bf16.msra.mxu0 %v541
      %619 = vmatprep.subr.bf16.mxu0 0
      %620 = vmatpush1.bf16.msra.mxu0 %v542
      %621 = vmatprep.subr.bf16.mxu0 0
      %622 = vmatpush1.bf16.msra.mxu0 %v543
      %623 = vmatprep.subr.bf16.mxu0 0
      %624 = vmatpush1.bf16.msra.mxu0 %v544
      %625 = vmatprep.mubr.bf16.mxu0 %v298
      %626 = vmatmul.mubr.bf16.gmra.mrb[0].mxu0 %v297
      %v627 = vpop.f32.mrb[0].mxu0
      %v628 = vadd.f32 0.0, %v627
      %v629 = vpop.f32.mrb[0].mxu0
      %v630 = vpop.f32.mrb[0].mxu0
      %v631 = vadd.f32 0.0, %v630
      %v632 = vpop.f32.mrb[0].mxu0
      %633 = vmatprep.mubr.bf16.mxu0 %v302
      %634 = vmatmul.mubr.bf16.gmra.mrb[0].mxu0 %v301
      %v635 = vpop.f32.mrb[0].mxu0
      %v636 = vadd.f32 0.0, %v635
      %v637 = vpop.f32.mrb[0].mxu0
      %v638 = vpop.f32.mrb[0].mxu0
      %v639 = vadd.f32 0.0, %v638
      %v640 = vpop.f32.mrb[0].mxu0
      %641 = vmatprep.mubr.bf16.mxu0 %v306
      %642 = vmatmul.mubr.bf16.gmra.mrb[0].mxu0 %v305
      %v643 = vpop.f32.mrb[0].mxu0
      %v644 = vadd.f32 0.0, %v643
      %v645 = vpop.f32.mrb[0].mxu0
      %v646 = vpop.f32.mrb[0].mxu0
      %v647 = vadd.f32 0.0, %v646
      %v648 = vpop.f32.mrb[0].mxu0
      %649 = vmatprep.mubr.bf16.mxu0 %v310
      %650 = vmatmul.mubr.bf16.gmra.mrb[0].mxu0 %v309
      %v651 = vpop.f32.mrb[0].mxu0
      %v652 = vadd.f32 0.0, %v651
      %v653 = vpop.f32.mrb[0].mxu0
      %v654 = vpop.f32.mrb[0].mxu0
      %v655 = vadd.f32 0.0, %v654
      %v656 = vpop.f32.mrb[0].mxu0
      %657 = vmatprep.mubr.bf16.mxu0 %v314
      %658 = vmatmul.mubr.bf16.gmra.mrb[0].mxu0 %v313
      %v659 = vpop.f32.mrb[0].mxu0
      %v660 = vadd.f32 0.0, %v659
      %v661 = vpop.f32.mrb[0].mxu0
      %v662 = vpop.f32.mrb[0].mxu0
      %v663 = vadd.f32 0.0, %v662
      %v664 = vpop.f32.mrb[0].mxu0
      %665 = vmatprep.mubr.bf16.mxu0 %v318
      %666 = vmatmul.mubr.bf16.gmra.mrb[0].mxu0 %v317
      %v667 = vpop.f32.mrb[0].mxu0
      %v668 = vadd.f32 0.0, %v667
      %v669 = vpop.f32.mrb[0].mxu0
      %v670 = vpop.f32.mrb[0].mxu0
      %v671 = vadd.f32 0.0, %v670
      %v672 = vpop.f32.mrb[0].mxu0
      %673 = vmatprep.mubr.bf16.mxu0 %v322
      %674 = vmatmul.mubr.bf16.gmra.mrb[0].mxu0 %v321
      %v675 = vpop.f32.mrb[0].mxu0
      %v676 = vadd.f32 0.0, %v675
      %v677 = vpop.f32.mrb[0].mxu0
      %v678 = vpop.f32.mrb[0].mxu0
      %v679 = vadd.f32 0.0, %v678
      %v680 = vpop.f32.mrb[0].mxu0
      %681 = vmatprep.mubr.bf16.mxu0 %v326
      %682 = vmatmul.mubr.bf16.gmra.mrb[0].mxu0 %v325
      %v683 = vpop.f32.mrb[0].mxu0
      %v684 = vadd.f32 0.0, %v683
      %v685 = vpop.f32.mrb[0].mxu0
      %v686 = vpop.f32.mrb[0].mxu0
      %v687 = vadd.f32 0.0, %v686
      %v688 = vpop.f32.mrb[0].mxu0
      %689 = vdwg.mxu0
      %690 = vmatprep.subr.bf16.mxu0 0
      %691 = vmatpush1.bf16.msra.mxu0 %v545
      %692 = vmatprep.subr.bf16.mxu0 0
      %693 = vmatpush1.bf16.msra.mxu0 %v546
      %694 = vmatprep.subr.bf16.mxu0 0
      %695 = vmatpush1.bf16.msra.mxu0 %v547
      %696 = vmatprep.subr.bf16.mxu0 0
      %697 = vmatpush1.bf16.msra.mxu0 %v548
      %698 = vmatprep.subr.bf16.mxu0 0
      %699 = vmatpush1.bf16.msra.mxu0 %v549
      %700 = vmatprep.subr.bf16.mxu0 0
      %701 = vmatpush1.bf16.msra.mxu0 %v550
      %702 = vmatprep.subr.bf16.mxu0 0
      %703 = vmatpush1.bf16.msra.mxu0 %v551
      %704 = vmatprep.subr.bf16.mxu0 0
      %705 = vmatpush1.bf16.msra.mxu0 %v552
      %706 = vmatprep.subr.bf16.mxu0 0
      %707 = vmatpush1.bf16.msra.mxu0 %v553
      %708 = vmatprep.subr.bf16.mxu0 0
      %709 = vmatpush1.bf16.msra.mxu0 %v554
      %710 = vmatprep.subr.bf16.mxu0 0
      %711 = vmatpush1.bf16.msra.mxu0 %v555
      %712 = vmatprep.subr.bf16.mxu0 0
      %713 = vmatpush1.bf16.msra.mxu0 %v556
      %714 = vmatprep.subr.bf16.mxu0 0
      %715 = vmatpush1.bf16.msra.mxu0 %v557
      %716 = vmatprep.subr.bf16.mxu0 0
      %717 = vmatpush1.bf16.msra.mxu0 %v558
      %718 = vmatprep.subr.bf16.mxu0 0
      %719 = vmatpush1.bf16.msra.mxu0 %v559
      %720 = vmatprep.subr.bf16.mxu0 0
      %721 = vmatpush1.bf16.msra.mxu0 %v560
      %722 = vmatprep.mubr.bf16.mxu0 %v300
      %723 = vmatmul.mubr.bf16.gmra.mrb[0].mxu0 %v299
      %v724 = vpop.f32.mrb[0].mxu0
      %v725 = vadd.f32 %v628, %v724
      %v726 = vpop.f32.mrb[0].mxu0
      %v727 = vpop.f32.mrb[0].mxu0
      %v728 = vadd.f32 %v631, %v727
      %v729 = vpop.f32.mrb[0].mxu0
      %730 = vmatprep.mubr.bf16.mxu0 %v304
      %731 = vmatmul.mubr.bf16.gmra.mrb[0].mxu0 %v303
      %v732 = vpop.f32.mrb[0].mxu0
      %v733 = vadd.f32 %v636, %v732
      %v734 = vpop.f32.mrb[0].mxu0
      %v735 = vpop.f32.mrb[0].mxu0
      %v736 = vadd.f32 %v639, %v735
      %v737 = vpop.f32.mrb[0].mxu0
      %738 = vmatprep.mubr.bf16.mxu0 %v308
      %739 = vmatmul.mubr.bf16.gmra.mrb[0].mxu0 %v307
      %v740 = vpop.f32.mrb[0].mxu0
      %v741 = vadd.f32 %v644, %v740
      %v742 = vpop.f32.mrb[0].mxu0
      %v743 = vpop.f32.mrb[0].mxu0
      %v744 = vadd.f32 %v647, %v743
      %v745 = vpop.f32.mrb[0].mxu0
      %746 = vmatprep.mubr.bf16.mxu0 %v312
      %747 = vmatmul.mubr.bf16.gmra.mrb[0].mxu0 %v311
      %v748 = vpop.f32.mrb[0].mxu0
      %v749 = vadd.f32 %v652, %v748
      %v750 = vpop.f32.mrb[0].mxu0
      %v751 = vpop.f32.mrb[0].mxu0
      %v752 = vadd.f32 %v655, %v751
      %v753 = vpop.f32.mrb[0].mxu0
      %754 = vmatprep.mubr.bf16.mxu0 %v316
      %755 = vmatmul.mubr.bf16.gmra.mrb[0].mxu0 %v315
      %v756 = vpop.f32.mrb[0].mxu0
      %v757 = vadd.f32 %v660, %v756
      %v758 = vpop.f32.mrb[0].mxu0
      %v759 = vpop.f32.mrb[0].mxu0
      %v760 = vadd.f32 %v663, %v759
      %v761 = vpop.f32.mrb[0].mxu0
      %762 = vmatprep.mubr.bf16.mxu0 %v320
      %763 = vmatmul.mubr.bf16.gmra.mrb[0].mxu0 %v319
      %v764 = vpop.f32.mrb[0].mxu0
      %v765 = vadd.f32 %v668, %v764
      %v766 = vpop.f32.mrb[0].mxu0
      %v767 = vpop.f32.mrb[0].mxu0
      %v768 = vadd.f32 %v671, %v767
      %v769 = vpop.f32.mrb[0].mxu0
      %770 = vmatprep.mubr.bf16.mxu0 %v324
      %771 = vmatmul.mubr.bf16.gmra.mrb[0].mxu0 %v323
      %v772 = vpop.f32.mrb[0].mxu0
      %v773 = vadd.f32 %v676, %v772
      %v774 = vpop.f32.mrb[0].mxu0
      %v775 = vpop.f32.mrb[0].mxu0
      %v776 = vadd.f32 %v679, %v775
      %v777 = vpop.f32.mrb[0].mxu0
      %778 = vmatprep.mubr.bf16.mxu0 %v328
      %779 = vmatmul.mubr.bf16.gmra.mrb[0].mxu0 %v327
      %v780 = vpop.f32.mrb[0].mxu0
      %v781 = vadd.f32 %v684, %v780
      %v782 = vpop.f32.mrb[0].mxu0
      %v783 = vpop.f32.mrb[0].mxu0
      %v784 = vadd.f32 %v687, %v783
      %v785 = vpop.f32.mrb[0].mxu0
      %786 = vdwg.mxu0
      %v787 = vpack.c.bf16 %v728, %v725
      %v788 = vpack.c.bf16 %v736, %v733
      %v789 = vpack.c.bf16 %v744, %v741
      %v790 = vpack.c.bf16 %v752, %v749
      %v791 = vpack.c.bf16 %v760, %v757
      %v792 = vpack.c.bf16 %v768, %v765
      %v793 = vpack.c.bf16 %v776, %v773
      %v794 = vpack.c.bf16 %v784, %v781
      %v803 = vunpack.c.l.b16 %v393
      %v804 = vunpack.c.h.b16 %v393
      %v805 = vunpack.c.l.b16 %v394
      %v806 = vunpack.c.h.b16 %v394
      %v807 = vunpack.c.l.b16 %v395
      %v808 = vunpack.c.h.b16 %v395
      %v809 = vunpack.c.l.b16 %v396
      %v810 = vunpack.c.h.b16 %v396
      %v811 = vunpack.c.l.b16 %v397
      %v812 = vunpack.c.h.b16 %v397
      %v813 = vunpack.c.l.b16 %v398
      %v814 = vunpack.c.h.b16 %v398
      %v815 = vunpack.c.l.b16 %v399
      %v816 = vunpack.c.h.b16 %v399
      %v817 = vunpack.c.l.b16 %v400
      %v818 = vunpack.c.h.b16 %v400
      %v819 = vpack.c.b16 %v807, %v803
      %v820 = vpack.c.b16 %v808, %v804
      %v821 = vpack.c.b16 %v809, %v805
      %v822 = vpack.c.b16 %v810, %v806
      %v823 = vpack.c.b16 %v815, %v811
      %v824 = vpack.c.b16 %v816, %v812
      %v825 = vpack.c.b16 %v817, %v813
      %v826 = vpack.c.b16 %v818, %v814
      %vm835 = vcmask 261120
      %v837 = vsel %vm835, %v787, 0
      %v840 = vsel %vm835, %v788, 0
      %v843 = vsel %vm835, %v789, 0
      %v846 = vsel %vm835, %v790, 0
      %v849 = vsel %vm835, %v791, 0
      %v852 = vsel %vm835, %v792, 0
      %v855 = vsel %vm835, %v793, 0
      %v858 = vsel %vm835, %v794, 0
      %860 = vmatprep.subr.bf16.mxu0 %v820
      %861 = vmatpush1.bf16.msra.mxu0 %v819
      %862 = vmatprep.subr.bf16.mxu0 %v824
      %863 = vmatpush1.bf16.msra.mxu0 %v823
      %864 = vmatprep.subr.bf16.mxu0 0
      %865 = vmatpush1.bf16.msra.mxu0 0
      %866 = vmatprep.subr.bf16.mxu0 0
      %867 = vmatpush1.bf16.msra.mxu0 0
      %868 = vmatprep.subr.bf16.mxu0 0
      %869 = vmatpush1.bf16.msra.mxu0 0
      %870 = vmatprep.subr.bf16.mxu0 0
      %871 = vmatpush1.bf16.msra.mxu0 0
      %872 = vmatprep.subr.bf16.mxu0 0
      %873 = vmatpush1.bf16.msra.mxu0 0
      %874 = vmatprep.subr.bf16.mxu0 0
      %875 = vmatpush1.bf16.msra.mxu0 0
      %876 = vmatprep.subr.bf16.mxu0 0
      %877 = vmatpush1.bf16.msra.mxu0 0
      %878 = vmatprep.subr.bf16.mxu0 0
      %879 = vmatpush1.bf16.msra.mxu0 0
      %880 = vmatprep.subr.bf16.mxu0 0
      %881 = vmatpush1.bf16.msra.mxu0 0
      %882 = vmatprep.subr.bf16.mxu0 0
      %883 = vmatpush1.bf16.msra.mxu0 0
      %884 = vmatprep.subr.bf16.mxu0 0
      %885 = vmatpush1.bf16.msra.mxu0 0
      %886 = vmatprep.subr.bf16.mxu0 0
      %887 = vmatpush1.bf16.msra.mxu0 0
      %888 = vmatprep.subr.bf16.mxu0 0
      %889 = vmatpush1.bf16.msra.mxu0 0
      %890 = vmatprep.subr.bf16.mxu0 0
      %891 = vmatpush1.bf16.msra.mxu0 0
      %892 = vmatprep.mubr.bf16.mxu0 0
      %893 = vmatmul.mubr.bf16.gmra.mrb[0].mxu0 %v837
      %v894 = vpop.f32.mrb[0].mxu0
      %v895 = vadd.f32 0.0, %v894
      %v896 = vpop.f32.mrb[0].mxu0
      %v897 = vadd.f32 0.0, %v896
      %v898 = vpop.f32.mrb[0].mxu0
      %v899 = vadd.f32 0.0, %v898
      %v900 = vpop.f32.mrb[0].mxu0
      %v901 = vadd.f32 0.0, %v900
      %902 = vmatprep.mubr.bf16.mxu0 0
      %903 = vmatmul.mubr.bf16.gmra.mrb[0].mxu0 %v840
      %v904 = vpop.f32.mrb[0].mxu0
      %v905 = vadd.f32 0.0, %v904
      %v906 = vpop.f32.mrb[0].mxu0
      %v907 = vadd.f32 0.0, %v906
      %v908 = vpop.f32.mrb[0].mxu0
      %v909 = vadd.f32 0.0, %v908
      %v910 = vpop.f32.mrb[0].mxu0
      %v911 = vadd.f32 0.0, %v910
      %912 = vmatprep.mubr.bf16.mxu0 0
      %913 = vmatmul.mubr.bf16.gmra.mrb[0].mxu0 %v843
      %v914 = vpop.f32.mrb[0].mxu0
      %v915 = vadd.f32 0.0, %v914
      %v916 = vpop.f32.mrb[0].mxu0
      %v917 = vadd.f32 0.0, %v916
      %v918 = vpop.f32.mrb[0].mxu0
      %v919 = vadd.f32 0.0, %v918
      %v920 = vpop.f32.mrb[0].mxu0
      %v921 = vadd.f32 0.0, %v920
      %922 = vmatprep.mubr.bf16.mxu0 0
      %923 = vmatmul.mubr.bf16.gmra.mrb[0].mxu0 %v846
      %v924 = vpop.f32.mrb[0].mxu0
      %v925 = vadd.f32 0.0, %v924
      %v926 = vpop.f32.mrb[0].mxu0
      %v927 = vadd.f32 0.0, %v926
      %v928 = vpop.f32.mrb[0].mxu0
      %v929 = vadd.f32 0.0, %v928
      %v930 = vpop.f32.mrb[0].mxu0
      %v931 = vadd.f32 0.0, %v930
      %932 = vmatprep.mubr.bf16.mxu0 0
      %933 = vmatmul.mubr.bf16.gmra.mrb[0].mxu0 %v849
      %v934 = vpop.f32.mrb[0].mxu0
      %v935 = vadd.f32 0.0, %v934
      %v936 = vpop.f32.mrb[0].mxu0
      %v937 = vadd.f32 0.0, %v936
      %v938 = vpop.f32.mrb[0].mxu0
      %v939 = vadd.f32 0.0, %v938
      %v940 = vpop.f32.mrb[0].mxu0
      %v941 = vadd.f32 0.0, %v940
      %942 = vmatprep.mubr.bf16.mxu0 0
      %943 = vmatmul.mubr.bf16.gmra.mrb[0].mxu0 %v852
      %v944 = vpop.f32.mrb[0].mxu0
      %v945 = vadd.f32 0.0, %v944
      %v946 = vpop.f32.mrb[0].mxu0
      %v947 = vadd.f32 0.0, %v946
      %v948 = vpop.f32.mrb[0].mxu0
      %v949 = vadd.f32 0.0, %v948
      %v950 = vpop.f32.mrb[0].mxu0
      %v951 = vadd.f32 0.0, %v950
      %952 = vmatprep.mubr.bf16.mxu0 0
      %953 = vmatmul.mubr.bf16.gmra.mrb[0].mxu0 %v855
      %v954 = vpop.f32.mrb[0].mxu0
      %v955 = vadd.f32 0.0, %v954
      %v956 = vpop.f32.mrb[0].mxu0
      %v957 = vadd.f32 0.0, %v956
      %v958 = vpop.f32.mrb[0].mxu0
      %v959 = vadd.f32 0.0, %v958
      %v960 = vpop.f32.mrb[0].mxu0
      %v961 = vadd.f32 0.0, %v960
      %962 = vmatprep.mubr.bf16.mxu0 0
      %963 = vmatmul.mubr.bf16.gmra.mrb[0].mxu0 %v858
      %v964 = vpop.f32.mrb[0].mxu0
      %v965 = vadd.f32 0.0, %v964
      %v966 = vpop.f32.mrb[0].mxu0
      %v967 = vadd.f32 0.0, %v966
      %v968 = vpop.f32.mrb[0].mxu0
      %v969 = vadd.f32 0.0, %v968
      %v970 = vpop.f32.mrb[0].mxu0
      %v971 = vadd.f32 0.0, %v970
      %972 = vdwg.mxu0
      %973 = vmatprep.subr.bf16.mxu0 %v822
      %974 = vmatpush1.bf16.msra.mxu0 %v821
      %975 = vmatprep.subr.bf16.mxu0 %v826
      %976 = vmatpush1.bf16.msra.mxu0 %v825
      %977 = vmatprep.subr.bf16.mxu0 0
      %978 = vmatpush1.bf16.msra.mxu0 0
      %979 = vmatprep.subr.bf16.mxu0 0
      %980 = vmatpush1.bf16.msra.mxu0 0
      %981 = vmatprep.subr.bf16.mxu0 0
      %982 = vmatpush1.bf16.msra.mxu0 0
      %983 = vmatprep.subr.bf16.mxu0 0
      %984 = vmatpush1.bf16.msra.mxu0 0
      %985 = vmatprep.subr.bf16.mxu0 0
      %986 = vmatpush1.bf16.msra.mxu0 0
      %987 = vmatprep.subr.bf16.mxu0 0
      %988 = vmatpush1.bf16.msra.mxu0 0
      %989 = vmatprep.subr.bf16.mxu0 0
      %990 = vmatpush1.bf16.msra.mxu0 0
      %991 = vmatprep.subr.bf16.mxu0 0
      %992 = vmatpush1.bf16.msra.mxu0 0
      %993 = vmatprep.subr.bf16.mxu0 0
      %994 = vmatpush1.bf16.msra.mxu0 0
      %995 = vmatprep.subr.bf16.mxu0 0
      %996 = vmatpush1.bf16.msra.mxu0 0
      %997 = vmatprep.subr.bf16.mxu0 0
      %998 = vmatpush1.bf16.msra.mxu0 0
      %999 = vmatprep.subr.bf16.mxu0 0
      %1000 = vmatpush1.bf16.msra.mxu0 0
      %1001 = vmatprep.subr.bf16.mxu0 0
      %1002 = vmatpush1.bf16.msra.mxu0 0
      %1003 = vmatprep.subr.bf16.mxu0 0
      %1004 = vmatpush1.bf16.msra.mxu0 0
      %1005 = vmatprep.mubr.bf16.mxu0 0
      %1006 = vmatmul.mubr.bf16.gmra.mrb[0].mxu0 %v837
      %v1007 = vpop.f32.mrb[0].mxu0
      %v1008 = vadd.f32 0.0, %v1007
      %v1009 = vpop.f32.mrb[0].mxu0
      %v1010 = vadd.f32 0.0, %v1009
      %v1011 = vpop.f32.mrb[0].mxu0
      %v1012 = vadd.f32 0.0, %v1011
      %v1013 = vpop.f32.mrb[0].mxu0
      %v1014 = vadd.f32 0.0, %v1013
      %1015 = vmatprep.mubr.bf16.mxu0 0
      %1016 = vmatmul.mubr.bf16.gmra.mrb[0].mxu0 %v840
      %v1017 = vpop.f32.mrb[0].mxu0
      %v1018 = vadd.f32 0.0, %v1017
      %v1019 = vpop.f32.mrb[0].mxu0
      %v1020 = vadd.f32 0.0, %v1019
      %v1021 = vpop.f32.mrb[0].mxu0
      %v1022 = vadd.f32 0.0, %v1021
      %v1023 = vpop.f32.mrb[0].mxu0
      %v1024 = vadd.f32 0.0, %v1023
      %1025 = vmatprep.mubr.bf16.mxu0 0
      %1026 = vmatmul.mubr.bf16.gmra.mrb[0].mxu0 %v843
      %v1027 = vpop.f32.mrb[0].mxu0
      %v1028 = vadd.f32 0.0, %v1027
      %v1029 = vpop.f32.mrb[0].mxu0
      %v1030 = vadd.f32 0.0, %v1029
      %v1031 = vpop.f32.mrb[0].mxu0
      %v1032 = vadd.f32 0.0, %v1031
      %v1033 = vpop.f32.mrb[0].mxu0
      %v1034 = vadd.f32 0.0, %v1033
      %1035 = vmatprep.mubr.bf16.mxu0 0
      %1036 = vmatmul.mubr.bf16.gmra.mrb[0].mxu0 %v846
      %v1037 = vpop.f32.mrb[0].mxu0
      %v1038 = vadd.f32 0.0, %v1037
      %v1039 = vpop.f32.mrb[0].mxu0
      %v1040 = vadd.f32 0.0, %v1039
      %v1041 = vpop.f32.mrb[0].mxu0
      %v1042 = vadd.f32 0.0, %v1041
      %v1043 = vpop.f32.mrb[0].mxu0
      %v1044 = vadd.f32 0.0, %v1043
      %1045 = vmatprep.mubr.bf16.mxu0 0
      %1046 = vmatmul.mubr.bf16.gmra.mrb[0].mxu0 %v849
      %v1047 = vpop.f32.mrb[0].mxu0
      %v1048 = vadd.f32 0.0, %v1047
      %v1049 = vpop.f32.mrb[0].mxu0
      %v1050 = vadd.f32 0.0, %v1049
      %v1051 = vpop.f32.mrb[0].mxu0
      %v1052 = vadd.f32 0.0, %v1051
      %v1053 = vpop.f32.mrb[0].mxu0
      %v1054 = vadd.f32 0.0, %v1053
      %1055 = vmatprep.mubr.bf16.mxu0 0
      %1056 = vmatmul.mubr.bf16.gmra.mrb[0].mxu0 %v852
      %v1057 = vpop.f32.mrb[0].mxu0
      %v1058 = vadd.f32 0.0, %v1057
      %v1059 = vpop.f32.mrb[0].mxu0
      %v1060 = vadd.f32 0.0, %v1059
      %v1061 = vpop.f32.mrb[0].mxu0
      %v1062 = vadd.f32 0.0, %v1061
      %v1063 = vpop.f32.mrb[0].mxu0
      %v1064 = vadd.f32 0.0, %v1063
      %1065 = vmatprep.mubr.bf16.mxu0 0
      %1066 = vmatmul.mubr.bf16.gmra.mrb[0].mxu0 %v855
      %v1067 = vpop.f32.mrb[0].mxu0
      %v1068 = vadd.f32 0.0, %v1067
      %v1069 = vpop.f32.mrb[0].mxu0
      %v1070 = vadd.f32 0.0, %v1069
      %v1071 = vpop.f32.mrb[0].mxu0
      %v1072 = vadd.f32 0.0, %v1071
      %v1073 = vpop.f32.mrb[0].mxu0
      %v1074 = vadd.f32 0.0, %v1073
      %1075 = vmatprep.mubr.bf16.mxu0 0
      %1076 = vmatmul.mubr.bf16.gmra.mrb[0].mxu0 %v858
      %v1077 = vpop.f32.mrb[0].mxu0
      %v1078 = vadd.f32 0.0, %v1077
      %v1079 = vpop.f32.mrb[0].mxu0
      %v1080 = vadd.f32 0.0, %v1079
      %v1081 = vpop.f32.mrb[0].mxu0
      %v1082 = vadd.f32 0.0, %v1081
      %v1083 = vpop.f32.mrb[0].mxu0
      %v1084 = vadd.f32 0.0, %v1083
      %1085 = vdwg.mxu0
      %v1086 = vsub.f32 %v895, %v233
      %v1087 = vsub.f32 %v897, %v234
      %v1088 = vsub.f32 %v1008, %v235
      %v1089 = vsub.f32 %v1010, %v236
      %v1090 = vsub.f32 %v899, %v237
      %v1091 = vsub.f32 %v901, %v238
      %v1092 = vsub.f32 %v1012, %v239
      %v1093 = vsub.f32 %v1014, %v240
      %v1094 = vsub.f32 %v905, %v241
      %v1095 = vsub.f32 %v907, %v242
      %v1096 = vsub.f32 %v1018, %v243
      %v1097 = vsub.f32 %v1020, %v244
      %v1098 = vsub.f32 %v909, %v245
      %v1099 = vsub.f32 %v911, %v246
      %v1100 = vsub.f32 %v1022, %v247
      %v1101 = vsub.f32 %v1024, %v248
      %v1102 = vsub.f32 %v915, %v249
      %v1103 = vsub.f32 %v917, %v250
      %v1104 = vsub.f32 %v1028, %v251
      %v1105 = vsub.f32 %v1030, %v252
      %v1106 = vsub.f32 %v919, %v253
      %v1107 = vsub.f32 %v921, %v254
      %v1108 = vsub.f32 %v1032, %v255
      %v1109 = vsub.f32 %v1034, %v256
      %v1110 = vsub.f32 %v925, %v257
      %v1111 = vsub.f32 %v927, %v258
      %v1112 = vsub.f32 %v1038, %v259
      %v1113 = vsub.f32 %v1040, %v260
      %v1114 = vsub.f32 %v929, %v261
      %v1115 = vsub.f32 %v931, %v262
      %v1116 = vsub.f32 %v1042, %v263
      %v1117 = vsub.f32 %v1044, %v264
      %v1118 = vsub.f32 %v935, %v265
      %v1119 = vsub.f32 %v937, %v266
      %v1120 = vsub.f32 %v1048, %v267
      %v1121 = vsub.f32 %v1050, %v268
      %v1122 = vsub.f32 %v939, %v269
      %v1123 = vsub.f32 %v941, %v270
      %v1124 = vsub.f32 %v1052, %v271
      %v1125 = vsub.f32 %v1054, %v272
      %v1126 = vsub.f32 %v945, %v273
      %v1127 = vsub.f32 %v947, %v274
      %v1128 = vsub.f32 %v1058, %v275
      %v1129 = vsub.f32 %v1060, %v276
      %v1130 = vsub.f32 %v949, %v277
      %v1131 = vsub.f32 %v951, %v278
      %v1132 = vsub.f32 %v1062, %v279
      %v1133 = vsub.f32 %v1064, %v280
      %v1134 = vsub.f32 %v955, %v281
      %v1135 = vsub.f32 %v957, %v282
      %v1136 = vsub.f32 %v1068, %v283
      %v1137 = vsub.f32 %v1070, %v284
      %v1138 = vsub.f32 %v959, %v285
      %v1139 = vsub.f32 %v961, %v286
      %v1140 = vsub.f32 %v1072, %v287
      %v1141 = vsub.f32 %v1074, %v288
      %v1142 = vsub.f32 %v965, %v289
      %v1143 = vsub.f32 %v967, %v290
      %v1144 = vsub.f32 %v1078, %v291
      %v1145 = vsub.f32 %v1080, %v292
      %v1146 = vsub.f32 %v969, %v293
      %v1147 = vsub.f32 %v971, %v294
      %v1148 = vsub.f32 %v1082, %v295
      %v1149 = vsub.f32 %v1084, %v296
      %v1150 = vmul.f32 %v1086, %v1086
      %v1151 = vmul.f32 %v1087, %v1087
      %v1152 = vmul.f32 %v1088, %v1088
      %v1153 = vmul.f32 %v1089, %v1089
      %v1154 = vmul.f32 %v1090, %v1090
      %v1155 = vmul.f32 %v1091, %v1091
      %v1156 = vmul.f32 %v1092, %v1092
      %v1157 = vmul.f32 %v1093, %v1093
      %v1158 = vmul.f32 %v1094, %v1094
      %v1159 = vmul.f32 %v1095, %v1095
      %v1160 = vmul.f32 %v1096, %v1096
      %v1161 = vmul.f32 %v1097, %v1097
      %v1162 = vmul.f32 %v1098, %v1098
      %v1163 = vmul.f32 %v1099, %v1099
      %v1164 = vmul.f32 %v1100, %v1100
      %v1165 = vmul.f32 %v1101, %v1101
      %v1166 = vmul.f32 %v1102, %v1102
      %v1167 = vmul.f32 %v1103, %v1103
      %v1168 = vmul.f32 %v1104, %v1104
      %v1169 = vmul.f32 %v1105, %v1105
      %v1170 = vmul.f32 %v1106, %v1106
      %v1171 = vmul.f32 %v1107, %v1107
      %v1172 = vmul.f32 %v1108, %v1108
      %v1173 = vmul.f32 %v1109, %v1109
      %v1174 = vmul.f32 %v1110, %v1110
      %v1175 = vmul.f32 %v1111, %v1111
      %v1176 = vmul.f32 %v1112, %v1112
      %v1177 = vmul.f32 %v1113, %v1113
      %v1178 = vmul.f32 %v1114, %v1114
      %v1179 = vmul.f32 %v1115, %v1115
      %v1180 = vmul.f32 %v1116, %v1116
      %v1181 = vmul.f32 %v1117, %v1117
      %v1182 = vmul.f32 %v1118, %v1118
      %v1183 = vmul.f32 %v1119, %v1119
      %v1184 = vmul.f32 %v1120, %v1120
      %v1185 = vmul.f32 %v1121, %v1121
      %v1186 = vmul.f32 %v1122, %v1122
      %v1187 = vmul.f32 %v1123, %v1123
      %v1188 = vmul.f32 %v1124, %v1124
      %v1189 = vmul.f32 %v1125, %v1125
      %v1190 = vmul.f32 %v1126, %v1126
      %v1191 = vmul.f32 %v1127, %v1127
      %v1192 = vmul.f32 %v1128, %v1128
      %v1193 = vmul.f32 %v1129, %v1129
      %v1194 = vmul.f32 %v1130, %v1130
      %v1195 = vmul.f32 %v1131, %v1131
      %v1196 = vmul.f32 %v1132, %v1132
      %v1197 = vmul.f32 %v1133, %v1133
      %v1198 = vmul.f32 %v1134, %v1134
      %v1199 = vmul.f32 %v1135, %v1135
      %v1200 = vmul.f32 %v1136, %v1136
      %v1201 = vmul.f32 %v1137, %v1137
      %v1202 = vmul.f32 %v1138, %v1138
      %v1203 = vmul.f32 %v1139, %v1139
      %v1204 = vmul.f32 %v1140, %v1140
      %v1205 = vmul.f32 %v1141, %v1141
      %v1206 = vmul.f32 %v1142, %v1142
      %v1207 = vmul.f32 %v1143, %v1143
      %v1208 = vmul.f32 %v1144, %v1144
      %v1209 = vmul.f32 %v1145, %v1145
      %v1210 = vmul.f32 %v1146, %v1146
      %v1211 = vmul.f32 %v1147, %v1147
      %v1212 = vmul.f32 %v1148, %v1148
      %v1213 = vmul.f32 %v1149, %v1149
      %v1214 = vadd.f32 %v1150, %v1151
      %v1215 = vadd.f32 %v1214, %v1152
      %v1216 = vadd.f32 %v1215, %v1153
      %1217 = vadd.xlane.f32.xlu0 %v1216
      %v1218 = vpop.xlane.xlu0 %1217
      %v1219 = vadd.f32 %v1154, %v1155
      %v1220 = vadd.f32 %v1219, %v1156
      %v1221 = vadd.f32 %v1220, %v1157
      %1222 = vadd.xlane.f32.xlu0 %v1221
      %v1223 = vpop.xlane.xlu0 %1222
      %v1224 = vadd.f32 %v1158, %v1159
      %v1225 = vadd.f32 %v1224, %v1160
      %v1226 = vadd.f32 %v1225, %v1161
      %1227 = vadd.xlane.f32.xlu0 %v1226
      %v1228 = vpop.xlane.xlu0 %1227
      %v1229 = vadd.f32 %v1162, %v1163
      %v1230 = vadd.f32 %v1229, %v1164
      %v1231 = vadd.f32 %v1230, %v1165
      %1232 = vadd.xlane.f32.xlu0 %v1231
      %v1233 = vpop.xlane.xlu0 %1232
      %v1234 = vadd.f32 %v1166, %v1167
      %v1235 = vadd.f32 %v1234, %v1168
      %v1236 = vadd.f32 %v1235, %v1169
      %1237 = vadd.xlane.f32.xlu0 %v1236
      %v1238 = vpop.xlane.xlu0 %1237
      %v1239 = vadd.f32 %v1170, %v1171
      %v1240 = vadd.f32 %v1239, %v1172
      %v1241 = vadd.f32 %v1240, %v1173
      %1242 = vadd.xlane.f32.xlu0 %v1241
      %v1243 = vpop.xlane.xlu0 %1242
      %v1244 = vadd.f32 %v1174, %v1175
      %v1245 = vadd.f32 %v1244, %v1176
      %v1246 = vadd.f32 %v1245, %v1177
      %1247 = vadd.xlane.f32.xlu0 %v1246
      %v1248 = vpop.xlane.xlu0 %1247
      %v1249 = vadd.f32 %v1178, %v1179
      %v1250 = vadd.f32 %v1249, %v1180
      %v1251 = vadd.f32 %v1250, %v1181
      %1252 = vadd.xlane.f32.xlu0 %v1251
      %v1253 = vpop.xlane.xlu0 %1252
      %v1254 = vadd.f32 %v1182, %v1183
      %v1255 = vadd.f32 %v1254, %v1184
      %v1256 = vadd.f32 %v1255, %v1185
      %1257 = vadd.xlane.f32.xlu0 %v1256
      %v1258 = vpop.xlane.xlu0 %1257
      %v1259 = vadd.f32 %v1186, %v1187
      %v1260 = vadd.f32 %v1259, %v1188
      %v1261 = vadd.f32 %v1260, %v1189
      %1262 = vadd.xlane.f32.xlu0 %v1261
      %v1263 = vpop.xlane.xlu0 %1262
      %v1264 = vadd.f32 %v1190, %v1191
      %v1265 = vadd.f32 %v1264, %v1192
      %v1266 = vadd.f32 %v1265, %v1193
      %1267 = vadd.xlane.f32.xlu0 %v1266
      %v1268 = vpop.xlane.xlu0 %1267
      %v1269 = vadd.f32 %v1194, %v1195
      %v1270 = vadd.f32 %v1269, %v1196
      %v1271 = vadd.f32 %v1270, %v1197
      %1272 = vadd.xlane.f32.xlu0 %v1271
      %v1273 = vpop.xlane.xlu0 %1272
      %v1274 = vadd.f32 %v1198, %v1199
      %v1275 = vadd.f32 %v1274, %v1200
      %v1276 = vadd.f32 %v1275, %v1201
      %1277 = vadd.xlane.f32.xlu0 %v1276
      %v1278 = vpop.xlane.xlu0 %1277
      %v1279 = vadd.f32 %v1202, %v1203
      %v1280 = vadd.f32 %v1279, %v1204
      %v1281 = vadd.f32 %v1280, %v1205
      %1282 = vadd.xlane.f32.xlu0 %v1281
      %v1283 = vpop.xlane.xlu0 %1282
      %v1284 = vadd.f32 %v1206, %v1207
      %v1285 = vadd.f32 %v1284, %v1208
      %v1286 = vadd.f32 %v1285, %v1209
      %1287 = vadd.xlane.f32.xlu0 %v1286
      %v1288 = vpop.xlane.xlu0 %1287
      %v1289 = vadd.f32 %v1210, %v1211
      %v1290 = vadd.f32 %v1289, %v1212
      %v1291 = vadd.f32 %v1290, %v1213
      %1292 = vadd.xlane.f32.xlu0 %v1291
      %v1293 = vpop.xlane.xlu0 %1292
      %v1310 = vlaneseq
      %v1311 = vand.u32 %v1310, 127
      %v1312 = vlaneseq
      %v1313 = vshrl.u32 %v1312, 7
      %v1314 = vsub.s32 %v1311, %v1313
      %v1315 = vrot.slane %v1218, %v1314
      %v1316 = vadd.s32 %v1311, 4294967288
      %v1317 = vlaneseq
      %v1318 = vshrl.u32 %v1317, 7
      %v1319 = vsub.s32 %v1316, %v1318
      %v1320 = vrot.slane %v1223, %v1319
      %vm1321 = vcmask 130112
      %v1322 = vsel %vm1321, %v1320, %v1315
      %v1323 = vadd.s32 %v1311, 4294967280
      %v1324 = vlaneseq
      %v1325 = vshrl.u32 %v1324, 7
      %v1326 = vsub.s32 %v1323, %v1325
      %v1327 = vrot.slane %v1228, %v1326
      %vm1328 = vcmask 195712
      %v1329 = vsel %vm1328, %v1327, %v1322
      %v1330 = vadd.s32 %v1311, 4294967272
      %v1331 = vlaneseq
      %v1332 = vshrl.u32 %v1331, 7
      %v1333 = vsub.s32 %v1330, %v1332
      %v1334 = vrot.slane %v1233, %v1333
      %vm1335 = vcmask 261312
      %v1336 = vsel %vm1335, %v1334, %v1329
      %v1337 = vadd.s32 %v1311, 4294967264
      %v1338 = vlaneseq
      %v1339 = vshrl.u32 %v1338, 7
      %v1340 = vsub.s32 %v1337, %v1339
      %v1341 = vrot.slane %v1238, %v1340
      %vm1342 = vcmask 326912
      %v1343 = vsel %vm1342, %v1341, %v1336
      %v1344 = vadd.s32 %v1311, 4294967256
      %v1345 = vlaneseq
      %v1346 = vshrl.u32 %v1345, 7
      %v1347 = vsub.s32 %v1344, %v1346
      %v1348 = vrot.slane %v1243, %v1347
      %vm1349 = vcmask 392512
      %v1350 = vsel %vm1349, %v1348, %v1343
      %v1351 = vadd.s32 %v1311, 4294967248
      %v1352 = vlaneseq
      %v1353 = vshrl.u32 %v1352, 7
      %v1354 = vsub.s32 %v1351, %v1353
      %v1355 = vrot.slane %v1248, %v1354
      %vm1356 = vcmask 458112
      %v1357 = vsel %vm1356, %v1355, %v1350
      %v1358 = vadd.s32 %v1311, 4294967240
      %v1359 = vlaneseq
      %v1360 = vshrl.u32 %v1359, 7
      %v1361 = vsub.s32 %v1358, %v1360
      %v1362 = vrot.slane %v1253, %v1361
      %vm1363 = vcmask 523712
      %v1364 = vsel %vm1363, %v1362, %v1357
      %v1365 = vadd.s32 %v1311, 4294967232
      %v1366 = vlaneseq
      %v1367 = vshrl.u32 %v1366, 7
      %v1368 = vsub.s32 %v1365, %v1367
      %v1369 = vrot.slane %v1258, %v1368
      %vm1370 = vcmask 589312
      %v1371 = vsel %vm1370, %v1369, %v1364
      %v1372 = vadd.s32 %v1311, 4294967224
      %v1373 = vlaneseq
      %v1374 = vshrl.u32 %v1373, 7
      %v1375 = vsub.s32 %v1372, %v1374
      %v1376 = vrot.slane %v1263, %v1375
      %vm1377 = vcmask 654912
      %v1378 = vsel %vm1377, %v1376, %v1371
      %v1379 = vadd.s32 %v1311, 4294967216
      %v1380 = vlaneseq
      %v1381 = vshrl.u32 %v1380, 7
      %v1382 = vsub.s32 %v1379, %v1381
      %v1383 = vrot.slane %v1268, %v1382
      %vm1384 = vcmask 720512
      %v1385 = vsel %vm1384, %v1383, %v1378
      %v1386 = vadd.s32 %v1311, 4294967208
      %v1387 = vlaneseq
      %v1388 = vshrl.u32 %v1387, 7
      %v1389 = vsub.s32 %v1386, %v1388
      %v1390 = vrot.slane %v1273, %v1389
      %vm1391 = vcmask 786112
      %v1392 = vsel %vm1391, %v1390, %v1385
      %v1393 = vadd.s32 %v1311, 4294967200
      %v1394 = vlaneseq
      %v1395 = vshrl.u32 %v1394, 7
      %v1396 = vsub.s32 %v1393, %v1395
      %v1397 = vrot.slane %v1278, %v1396
      %vm1398 = vcmask 851712
      %v1399 = vsel %vm1398, %v1397, %v1392
      %v1400 = vadd.s32 %v1311, 4294967192
      %v1401 = vlaneseq
      %v1402 = vshrl.u32 %v1401, 7
      %v1403 = vsub.s32 %v1400, %v1402
      %v1404 = vrot.slane %v1283, %v1403
      %vm1405 = vcmask 917312
      %v1406 = vsel %vm1405, %v1404, %v1399
      %v1407 = vadd.s32 %v1311, 4294967184
      %v1408 = vlaneseq
      %v1409 = vshrl.u32 %v1408, 7
      %v1410 = vsub.s32 %v1407, %v1409
      %v1411 = vrot.slane %v1288, %v1410
      %vm1412 = vcmask 982912
      %v1413 = vsel %vm1412, %v1411, %v1406
      %v1414 = vadd.s32 %v1311, 4294967176
      %v1415 = vlaneseq
      %v1416 = vshrl.u32 %v1415, 7
      %v1417 = vsub.s32 %v1414, %v1416
      %v1418 = vrot.slane %v1293, %v1417
      %vm1419 = vcmask 1048512
      %v1420 = vsel %vm1419, %v1418, %v1413
      %1422 = vst [vmem:[%s231] sm:$0x1] %v1420
      %p1423 = scmp.lt.s32.totalorder %s19, 3
      %s1424 = scalar_select %p1423, %s19, 3
      %p1425 = scmp.lt.s32.totalorder %s18, 0
      %s1426 = scalar_select %p1425, %s18, 0
      %s1427 = sadd.s32 %s1426, %s1424
      %s1428 = scalar_lea.vmem %s3, %s1427
      // Predicated region
      $region33: #{classifier_forward.1} parent=31 // pred_check
        %p1429 = pneg %p124
      $region34: #{classifier_forward.1} parent=31 // pred_check_branch
        %1431 = sbr.rel (%p1429) target = $region36
      $region35: #{classifier_forward.1} parent=31 // pred_region
        _
      $region36: #{classifier_forward.1} parent=31 // pred_fallthru
        _
    $region32: #{classifier_forward.1} parent=5 // pred_fallthru
      _
    %p1432 = scmp.le.s32.totalorder 2, %s9
    // Predicated region
    $region37: #{classifier_forward.1} parent=5 // pred_check
      %p1433 = pneg %p1432
    $region38: #{classifier_forward.1} parent=5 // pred_check_branch
      %1435 = sbr.rel (%p1433) target = $region40
    $region39: #{classifier_forward.1} parent=5 // pred_region
      %s1436 = ssub.s32 %s9, 2
      // Predicated region
      $region41: #{classifier_forward.1} parent=39 // pred_check
        %p1437 = pneg %p130
      $region42: #{classifier_forward.1} parent=39 // pred_check_branch
        %1439 = sbr.rel (%p1437) target = $region44
      $region43: #{classifier_forward.1} parent=39 // pred_region
        %p1440 = scmp.lt.s32.totalorder %s21, 3
        %s1441 = scalar_select %p1440, %s21, 3
        %p1442 = scmp.lt.s32.totalorder %s20, 0
        %s1443 = scalar_select %p1442, %s20, 0
        %s1444 = sadd.s32 %s1443, %s1441
        %s1445 = scalar_lea.vmem %s3, %s1444
      $region44: #{classifier_forward.1} parent=39 // pred_fallthru
        _
    $region40: #{classifier_forward.1} parent=5 // pred_fallthru
      _
  $region6: #{classifier_forward.1} parent=0 // loop_footer
    %s13 = sadd.s32 1, %s9
  $region7: #{classifier_forward.1} parent=0 // loop_footer_branch
    %8 = sbr.rel target = $region3
  $region8: #{classifier_forward.1} parent=0 // loop_exit
    _

</llo_original>
